<compile_context>
chip_gen: v6e
topology: v6e:2x2x1
jax: 0.10.0
libtpu: 0.0.40
codegen_flags: <defaults>
</compile_context>

<pallas_src>
import functools

import jax
import jax.numpy as jnp
from jax.experimental import pallas as pl
from jax.experimental.pallas import tpu as pltpu


def _round_up(x, m):
    return (x + m - 1) // m * m


# =====================================================================
# pass 1: conv rows (im2col K-packed bf16 MXU matmul, f32 acc)
#         + per-(batch, channel) sum / sum-of-squares accumulation
# =====================================================================

def conv_rows_kernel(x_ref, w_ref, y_ref, stats_ref, *,
                     kh, kw, sh, sw, dh, dw, tr, w_out):
    # x_ref:     (1, H_pad, W_pad, Cin)   bf16, resident across (g, r)
    # w_ref:     (KH*KW*Cin, 128)         bf16, resident across r
    # y_ref:     (1, TR, W_out, 128)      f32 conv output row tile
    # stats_ref: (1, 2, 128)              f32 [sum, sumsq], accumulated over r
    r = pl.program_id(2)
    cin = x_ref.shape[-1]
    tc = w_ref.shape[-1]

    # Input row band feeding this output row tile (sliced from the resident ref,
    # not a full-image value copy).
    band_rows = (tr - 1) * sh + (kh - 1) * dh + 1
    row0 = pl.multiple_of(r * (tr * sh), tr * sh)
    band = x_ref[0, pl.ds(row0, band_rows), :, :]            # (band_rows, W_pad, Cin)

    # im2col patch: taps packed into the contraction dim, tap-major / Cin-minor to
    # match the (KH, KW, Cin, Cout_p) -> (KH*KW*Cin, Cout_p) weight reshape.
    cols = []
    for ikh in range(kh):
        for ikw in range(kw):
            r_lo = ikh * dh
            c_lo = ikw * dw
            cols.append(band[r_lo:r_lo + (tr - 1) * sh + 1:sh,
                             c_lo:c_lo + (w_out - 1) * sw + 1:sw, :])
    patch = jnp.concatenate(cols, axis=-1)                   # (TR, W_out, KH*KW*Cin)
    patch = patch.reshape(tr * w_out, kh * kw * cin)

    # Single K-packed MXU matmul with f32 accumulation.
    acc = jnp.dot(patch, w_ref[...], preferred_element_type=jnp.float32)

    y_ref[0] = acc.reshape(tr, w_out, tc).astype(y_ref.dtype)

    # One-pass InstanceNorm statistics, accumulated across row tiles (the stats
    # block index is constant along r -> it stays resident in VMEM).
    @pl.when(r == 0)
    def _():
        stats_ref[...] = jnp.zeros_like(stats_ref)

    stats_ref[0, 0:1, :] += jnp.sum(acc, axis=0, keepdims=True)
    stats_ref[0, 1:2, :] += jnp.sum(acc * acc, axis=0, keepdims=True)


# =====================================================================
# pass 2: InstanceNorm (from accumulated stats) + LeakyReLU, per row tile
# =====================================================================

def in_lrelu_kernel(y_ref, stats_ref, o_ref, *, inv_count, use_in, relu, eps,
                    neg_slope):
    y = y_ref[0].astype(jnp.float32)                          # (TR, W_out, 128)
    if use_in:
        s = stats_ref[0]                                      # (2, 128) f32
        mean = s[0:1, :] * inv_count                          # (1, 128)
        var = jnp.maximum(s[1:2, :] * inv_count - mean * mean, 0.0)
        inv_std = jax.lax.rsqrt(var + eps)                    # EUP
        y = (y - mean[None]) * inv_std[None]
    if relu:
        y = jnp.where(y >= 0, y, neg_slope * y)               # LeakyReLU
    o_ref[0] = y.astype(o_ref.dtype)


# =====================================================================
# wrapper (PyTorch NCHW / OIHW interface; NHWC channels-in-lanes inside)
# =====================================================================

def basic_conv_in_2d(x_nchw, weight_oihw, *, stride=(1, 1), padding=(1, 1),
                     dilation=(1, 1), use_in=True, relu=True, eps=1e-5,
                     negative_slope=0.01, row_tile=None):
    # Boundary transposes only exist to match the PyTorch NCHW interface.
    x = jnp.transpose(x_nchw, (0, 2, 3, 1)).astype(jnp.bfloat16)        # NHWC bf16
    w = jnp.transpose(weight_oihw, (2, 3, 1, 0)).astype(jnp.bfloat16)   # HWIO bf16

    n, h, wd, cin = x.shape
    kh, kw, _, cout = w.shape
    sh, sw = stride
    ph, pw = padding
    dh, dw = dilation
    h_out = (h + 2 * ph - dh * (kh - 1) - 1) // sh + 1
    w_out = (wd + 2 * pw - dw * (kw - 1) - 1) // sw + 1

    # Lane-dense output channels: zero-pad Cout up to a multiple of 128.
    tc = 128
    cout_p = _round_up(cout, tc)
    groups = cout_p // tc
    w = jnp.pad(w, ((0, 0), (0, 0), (0, 0), (0, cout_p - cout)))
    w2 = w.reshape(kh * kw * cin, cout_p)                     # K-packed weights

    # TODO(synk): replace this wrapper-side pad with in-kernel halo DMA.
    x_pad = jnp.pad(x, ((0, 0), (ph, ph), (pw, pw), (0, 0)))
    h_pad, w_pad = h + 2 * ph, wd + 2 * pw

    # Output-row tile (a divisor of H_out) bounds the per-step block size.
    if row_tile is None:
        row_tile = max(1, min(h_out, 4096 // max(w_out, 1)))
    tr = 1
    for t in range(min(row_tile, h_out), 0, -1):
        if h_out % t == 0:
            tr = t
            break
    row_tiles = h_out // tr

    grid = (n, groups, row_tiles)                             # row-tile innermost
    # Row-tile axis carries the stats reduction -> "arbitrary"; batch / channel
    # group are independent -> "parallel" (megacore on v7x).
    sem_conv = ("parallel", "parallel", "arbitrary")

    # VMEM budget sized from the actual block shapes (x2 for double buffering),
    # capped to the chip's capacity (64 MiB v7x, 128 MiB v5e/v6e).
    try:
        vmem_cap = pltpu.get_tpu_info().vmem_capacity_bytes
    except Exception:
        vmem_cap = 64 * 1024 * 1024
    blk_conv = (h_pad * w_pad * cin * 2 + kh * kw * cin * tc * 2
                + tr * w_out * tc * 4 + 2 * tc * 4)
    vmem_conv = int(min(0.8 * vmem_cap, max(2 * blk_conv + (2 << 20), 32 << 20)))
    blk_norm = 2 * tr * w_out * tc * 4 + 2 * tc * 4
    vmem_norm = int(min(0.8 * vmem_cap, max(2 * blk_norm + (2 << 20), 32 << 20)))

    conv_kernel = functools.partial(
        conv_rows_kernel, kh=kh, kw=kw, sh=sh, sw=sw, dh=dh, dw=dw,
        tr=tr, w_out=w_out)
    conv_cost = pl.CostEstimate(
        flops=2 * n * h_out * w_out * kh * kw * cin * cout_p,
        transcendentals=0,
        bytes_accessed=2 * (x_pad.size + w2.size)
                       + 4 * (n * h_out * w_out * cout_p + n * 2 * cout_p))

    conv_out, stats = pl.pallas_call(
        conv_kernel,
        out_shape=(jax.ShapeDtypeStruct((n, h_out, w_out, cout_p), jnp.float32),
                   jax.ShapeDtypeStruct((n, 2, cout_p), jnp.float32)),
        grid=grid,
        in_specs=[
            # Full padded image: block index ignores (g, r) -> DMA'd once per batch
            # item and reused across all channel groups and row tiles.
            pl.BlockSpec((1, h_pad, w_pad, cin), lambda b, g, r: (b, 0, 0, 0)),
            # K-packed weight slab for this channel group: ignores r -> resident.
            pl.BlockSpec((kh * kw * cin, tc), lambda b, g, r: (0, g)),
        ],
        out_specs=[
            pl.BlockSpec((1, tr, w_out, tc), lambda b, g, r: (b, r, 0, g)),
            pl.BlockSpec((1, 2, tc), lambda b, g, r: (b, 0, g)),
        ],
        compiler_params=pltpu.CompilerParams(
            dimension_semantics=sem_conv, vmem_limit_bytes=vmem_conv),
        cost_estimate=conv_cost,
    )(x_pad, w2)

    norm_kernel = functools.partial(
        in_lrelu_kernel, inv_count=1.0 / float(h_out * w_out), use_in=use_in,
        relu=relu, eps=eps, neg_slope=negative_slope)
    norm_cost = pl.CostEstimate(
        flops=6 * n * h_out * w_out * cout_p,
        transcendentals=n * cout_p,
        bytes_accessed=4 * (2 * n * h_out * w_out * cout_p + n * 2 * cout_p))

    out_nhwc = pl.pallas_call(
        norm_kernel,
        out_shape=jax.ShapeDtypeStruct((n, h_out, w_out, cout_p), jnp.float32),
        grid=grid,
        in_specs=[
            pl.BlockSpec((1, tr, w_out, tc), lambda b, g, r: (b, r, 0, g)),
            pl.BlockSpec((1, 2, tc), lambda b, g, r: (b, 0, g)),
        ],
        out_specs=pl.BlockSpec((1, tr, w_out, tc), lambda b, g, r: (b, r, 0, g)),
        compiler_params=pltpu.CompilerParams(
            dimension_semantics=("parallel", "parallel", "parallel"),
            vmem_limit_bytes=vmem_norm),
        cost_estimate=norm_cost,
    )(conv_out, stats)

    # Strip channel padding, back to NCHW f32 (PyTorch interface).
    return jnp.transpose(out_nhwc[..., :cout], (0, 3, 1, 2))


# =====================================================================
# pure-JAX reference
# =====================================================================

def reference_forward(x_nchw, weight_oihw, stride, padding, dilation,
                      use_in=True, relu=True, eps=1e-5, negative_slope=0.01,
                      conv_dtype=jnp.float32):
    y = jax.lax.conv_general_dilated(
        x_nchw.astype(conv_dtype), weight_oihw.astype(conv_dtype),
        window_strides=stride,
        padding=((padding[0], padding[0]), (padding[1], padding[1])),
        rhs_dilation=dilation,
        dimension_numbers=("NCHW", "OIHW", "NCHW"),
        preferred_element_type=jnp.float32)
    if use_in:
        mean = jnp.mean(y, axis=(2, 3), keepdims=True)
        var = jnp.var(y, axis=(2, 3), keepdims=True)
        y = (y - mean) * jax.lax.rsqrt(var + eps)
    if relu:
        y = jnp.where(y >= 0, y, negative_slope * y)
    return y


# =====================================================================
# demo
# =====================================================================

if __name__ == "__main__":
    key = jax.random.PRNGKey(0)
    k1, k2, k3, k4 = jax.random.split(key, 4)

    # Config A: BasicConv_IN(4, 8, kernel_size=3, stride=1, padding=1), two row tiles.
    B, CIN, COUT, H, W = 2, 4, 8, 16, 16
    xa = jax.random.normal(k1, (B, CIN, H, W), jnp.float32)
    wa = 0.1 * jax.random.normal(k2, (COUT, CIN, 3, 3), jnp.float32)

    fwd_a = jax.jit(functools.partial(
        basic_conv_in_2d, stride=(1, 1), padding=(1, 1), dilation=(1, 1),
        use_in=True, relu=True, row_tile=8))
    out_a = jax.block_until_ready(fwd_a(xa, wa))
    assert out_a.shape == (B, COUT, H, W) and out_a.dtype == jnp.float32
    assert bool(jnp.all(jnp.isfinite(out_a)))
    ref_a16 = reference_forward(xa, wa, (1, 1), (1, 1), (1, 1),
                                conv_dtype=jnp.bfloat16)
    ref_a32 = reference_forward(xa, wa, (1, 1), (1, 1), (1, 1),
                                conv_dtype=jnp.float32)
    err16 = float(jnp.max(jnp.abs(out_a - ref_a16)))
    err32 = float(jnp.max(jnp.abs(out_a - ref_a32)))
    assert err16 < 1e-2, f"config A err vs bf16-conv reference: {err16}"
    assert err32 < 5e-2, f"config A err vs f32 reference: {err32}"

    # Config B: stride-2 downsampling conv, BasicConv_IN(8, 16, 3, stride=2, pad=1).
    xb = jax.random.normal(k3, (1, 8, 16, 16), jnp.float32)
    wb = 0.1 * jax.random.normal(k4, (16, 8, 3, 3), jnp.float32)
    fwd_b = jax.jit(functools.partial(
        basic_conv_in_2d, stride=(2, 2), padding=(1, 1), dilation=(1, 1),
        use_in=True, relu=True))
    out_b = jax.block_until_ready(fwd_b(xb, wb))
    assert out_b.shape == (1, 16, 8, 8)
    ref_b16 = reference_forward(xb, wb, (2, 2), (1, 1), (1, 1),
                                conv_dtype=jnp.bfloat16)
    errb = float(jnp.max(jnp.abs(out_b - ref_b16)))
    assert errb < 1e-2, f"config B err vs bf16-conv reference: {errb}"

    # Config C: conv only (IN=False, relu=False).
    fwd_c = jax.jit(functools.partial(
        basic_conv_in_2d, stride=(1, 1), padding=(1, 1), dilation=(1, 1),
        use_in=False, relu=False))
    out_c = jax.block_until_ready(fwd_c(xa, wa))
    ref_c16 = reference_forward(xa, wa, (1, 1), (1, 1), (1, 1),
                                use_in=False, relu=False, conv_dtype=jnp.bfloat16)
    errc = float(jnp.max(jnp.abs(out_c - ref_c16)))
    assert errc < 1e-2, f"config C err vs bf16-conv reference: {errc}"

    print("KERNEL_OK")
</pallas_src>

<mosaic_0001>
module attributes {stable_mosaic.version = 11 : i64} {
  func.func @in_lrelu_kernel(%arg0: i32, %arg1: i32, %arg2: i32, %arg3: memref<1x8x16x128xf32, #tpu.memory_space<vmem>>, %arg4: memref<1x2x128xf32, #tpu.memory_space<vmem>>, %arg5: memref<1x8x16x128xf32, #tpu.memory_space<vmem>>) attributes {dimension_semantics = [#tpu.dimension_semantics<parallel>, #tpu.dimension_semantics<parallel>, #tpu.dimension_semantics<parallel>], iteration_bounds = array<i64: 2, 1, 2>, scalar_prefetch = 0 : i64, scratch_operands = 0 : i64, tpu.core_type = #tpu.core_type<tc>, window_params = [{transform_indices = @transform_0, window_bounds = array<i64: 1, 8, 16, 128>}, {transform_indices = @transform_1, window_bounds = array<i64: 1, 2, 128>}, {transform_indices = @transform_2, window_bounds = array<i64: 1, 8, 16, 128>}]} {
    %c0 = arith.constant 0 : index
    %c0_0 = arith.constant 0 : index
    %c0_1 = arith.constant 0 : index
    %c0_2 = arith.constant 0 : index
    %0 = vector.load %arg3[%c0, %c0_0, %c0_1, %c0_2] : memref<1x8x16x128xf32, #tpu.memory_space<vmem>>, vector<1x8x16x128xf32>
    %1 = vector.shape_cast %0 : vector<1x8x16x128xf32> to vector<8x16x128xf32>
    %c0_3 = arith.constant 0 : index
    %c0_4 = arith.constant 0 : index
    %c0_5 = arith.constant 0 : index
    %2 = vector.load %arg4[%c0_3, %c0_4, %c0_5] : memref<1x2x128xf32, #tpu.memory_space<vmem>>, vector<1x2x128xf32>
    %3 = vector.shape_cast %2 : vector<1x2x128xf32> to vector<2x128xf32>
    %4 = vector.extract_strided_slice %3 {offsets = [0, 0], sizes = [1, 128], strides = [1, 1]} : vector<2x128xf32> to vector<1x128xf32>
    %cst = arith.constant 3.906250e-03 : f32
    %5 = vector.broadcast %cst : f32 to vector<1x128xf32>
    %6 = arith.mulf %4, %5 : vector<1x128xf32>
    %7 = vector.extract_strided_slice %3 {offsets = [1, 0], sizes = [1, 128], strides = [1, 1]} : vector<2x128xf32> to vector<1x128xf32>
    %cst_6 = arith.constant 3.906250e-03 : f32
    %8 = vector.broadcast %cst_6 : f32 to vector<1x128xf32>
    %9 = arith.mulf %7, %8 : vector<1x128xf32>
    %10 = arith.mulf %6, %6 : vector<1x128xf32>
    %11 = arith.subf %9, %10 : vector<1x128xf32>
    %cst_7 = arith.constant 0.000000e+00 : f32
    %12 = vector.broadcast %cst_7 : f32 to vector<1x128xf32>
    %13 = arith.maximumf %11, %12 : vector<1x128xf32>
    %cst_8 = arith.constant 9.99999974E-6 : f32
    %14 = vector.broadcast %cst_8 : f32 to vector<1x128xf32>
    %15 = arith.addf %13, %14 : vector<1x128xf32>
    %16 = math.rsqrt %15 : vector<1x128xf32>
    %17 = vector.shape_cast %6 : vector<1x128xf32> to vector<1x1x128xf32>
    %18 = vector.broadcast %17 : vector<1x1x128xf32> to vector<8x16x128xf32>
    %19 = arith.subf %1, %18 : vector<8x16x128xf32>
    %20 = vector.shape_cast %16 : vector<1x128xf32> to vector<1x1x128xf32>
    %21 = vector.broadcast %20 : vector<1x1x128xf32> to vector<8x16x128xf32>
    %22 = arith.mulf %19, %21 : vector<8x16x128xf32>
    %cst_9 = arith.constant 0.000000e+00 : f32
    %23 = vector.broadcast %cst_9 : f32 to vector<8x16x128xf32>
    %24 = arith.cmpf oge, %22, %23 : vector<8x16x128xf32>
    %cst_10 = arith.constant 0.00999999977 : f32
    %25 = vector.broadcast %cst_10 : f32 to vector<8x16x128xf32>
    %26 = arith.mulf %25, %22 : vector<8x16x128xf32>
    %27 = arith.select %24, %22, %26 : vector<8x16x128xi1>, vector<8x16x128xf32>
    %c0_11 = arith.constant 0 : index
    %c0_12 = arith.constant 0 : index
    %c0_13 = arith.constant 0 : index
    %c0_14 = arith.constant 0 : index
    %28 = vector.load %arg5[%c0_11, %c0_12, %c0_13, %c0_14] : memref<1x8x16x128xf32, #tpu.memory_space<vmem>>, vector<1x8x16x128xf32>
    %29 = vector.shape_cast %28 : vector<1x8x16x128xf32> to vector<8x16x128xf32>
    %30 = vector.shape_cast %27 : vector<8x16x128xf32> to vector<1x8x16x128xf32>
    tpu.vector_store %arg5[%c0_11, %c0_12, %c0_13, %c0_14], %30 {strides = array<i32>} : memref<1x8x16x128xf32, #tpu.memory_space<vmem>>, vector<1x8x16x128xf32>,
    return
  }
  func.func @transform_0(%arg0: i32, %arg1: i32, %arg2: i32) -> (i32, i32, i32, i32) {
    %c0_i32 = arith.constant 0 : i32
    %c0_i32_0 = arith.constant 0 : i32
    return %arg0, %arg2, %c0_i32, %arg1 : i32, i32, i32, i32
  }
  func.func @transform_1(%arg0: i32, %arg1: i32, %arg2: i32) -> (i32, i32, i32) {
    %c0_i32 = arith.constant 0 : i32
    %c0_i32_0 = arith.constant 0 : i32
    return %arg0, %c0_i32, %arg1 : i32, i32, i32
  }
  func.func @transform_2(%arg0: i32, %arg1: i32, %arg2: i32) -> (i32, i32, i32, i32) {
    %c0_i32 = arith.constant 0 : i32
    %c0_i32_0 = arith.constant 0 : i32
    return %arg0, %arg2, %c0_i32, %arg1 : i32, i32, i32, i32
  }
}

module attributes {stable_mosaic.version = 11 : i64} {
  func.func @conv_rows_kernel(%arg0: i32, %arg1: i32, %arg2: i32, %arg3: memref<1x18x18x4xbf16, #tpu.memory_space<vmem>>, %arg4: memref<36x128xbf16, #tpu.memory_space<vmem>>, %arg5: memref<1x8x16x128xf32, #tpu.memory_space<vmem>>, %arg6: memref<1x2x128xf32, #tpu.memory_space<vmem>>) attributes {dimension_semantics = [#tpu.dimension_semantics<parallel>, #tpu.dimension_semantics<parallel>, #tpu.dimension_semantics<arbitrary>], iteration_bounds = array<i64: 2, 1, 2>, scalar_prefetch = 0 : i64, scratch_operands = 0 : i64, tpu.core_type = #tpu.core_type<tc>, window_params = [{transform_indices = @transform_0, window_bounds = array<i64: 1, 18, 18, 4>}, {transform_indices = @transform_1, window_bounds = array<i64: 36, 128>}, {transform_indices = @transform_2, window_bounds = array<i64: 1, 8, 16, 128>}, {transform_indices = @transform_3, window_bounds = array<i64: 1, 2, 128>}]} {
    %c8_i32 = arith.constant 8 : i32
    %0 = arith.muli %arg2, %c8_i32 : i32
    %1 = tpu.assume_multiple %0, 8 : i32
    %c0 = arith.constant 0 : index
    %2 = arith.index_cast %1 : i32 to index
    %c0_0 = arith.constant 0 : index
    %c0_1 = arith.constant 0 : index
    %3 = vector.load %arg3[%c0, %2, %c0_0, %c0_1] : memref<1x18x18x4xbf16, #tpu.memory_space<vmem>>, vector<1x10x18x4xbf16>
    %4 = vector.shape_cast %3 : vector<1x10x18x4xbf16> to vector<10x18x4xbf16>
    %5 = vector.extract_strided_slice %4 {offsets = [0, 0, 0], sizes = [8, 16, 4], strides = [1, 1, 1]} : vector<10x18x4xbf16> to vector<8x16x4xbf16>
    %6 = vector.extract_strided_slice %4 {offsets = [0, 1, 0], sizes = [8, 16, 4], strides = [1, 1, 1]} : vector<10x18x4xbf16> to vector<8x16x4xbf16>
    %7 = vector.extract_strided_slice %4 {offsets = [0, 2, 0], sizes = [8, 16, 4], strides = [1, 1, 1]} : vector<10x18x4xbf16> to vector<8x16x4xbf16>
    %8 = vector.extract_strided_slice %4 {offsets = [1, 0, 0], sizes = [8, 16, 4], strides = [1, 1, 1]} : vector<10x18x4xbf16> to vector<8x16x4xbf16>
    %9 = vector.extract_strided_slice %4 {offsets = [1, 1, 0], sizes = [8, 16, 4], strides = [1, 1, 1]} : vector<10x18x4xbf16> to vector<8x16x4xbf16>
    %10 = vector.extract_strided_slice %4 {offsets = [1, 2, 0], sizes = [8, 16, 4], strides = [1, 1, 1]} : vector<10x18x4xbf16> to vector<8x16x4xbf16>
    %11 = vector.extract_strided_slice %4 {offsets = [2, 0, 0], sizes = [8, 16, 4], strides = [1, 1, 1]} : vector<10x18x4xbf16> to vector<8x16x4xbf16>
    %12 = vector.extract_strided_slice %4 {offsets = [2, 1, 0], sizes = [8, 16, 4], strides = [1, 1, 1]} : vector<10x18x4xbf16> to vector<8x16x4xbf16>
    %13 = vector.extract_strided_slice %4 {offsets = [2, 2, 0], sizes = [8, 16, 4], strides = [1, 1, 1]} : vector<10x18x4xbf16> to vector<8x16x4xbf16>
    %14 = tpu.concatenate %5, %6, %7, %8, %9, %10, %11, %12, %13 in 2 : vector<8x16x4xbf16>, vector<8x16x4xbf16>, vector<8x16x4xbf16>, vector<8x16x4xbf16>, vector<8x16x4xbf16>, vector<8x16x4xbf16>, vector<8x16x4xbf16>, vector<8x16x4xbf16>, vector<8x16x4xbf16> -> vector<8x16x36xbf16>
    %15 = vector.shape_cast %14 : vector<8x16x36xbf16> to vector<128x36xbf16>
    %c0_2 = arith.constant 0 : index
    %c0_3 = arith.constant 0 : index
    %16 = vector.load %arg4[%c0_2, %c0_3] : memref<36x128xbf16, #tpu.memory_space<vmem>>, vector<36x128xbf16>
    %cst = arith.constant dense<0.000000e+00> : vector<128x128xf32>
    %17 = tpu.matmul %15, %16, %cst {dimension_numbers = #tpu.dot_dimension_numbers<[1], [0], [0], [1], [0, 0, 1, 1], [], []>} : vector<128x36xbf16>, vector<36x128xbf16>, vector<128x128xf32> -> vector<128x128xf32>
    %18 = vector.shape_cast %17 : vector<128x128xf32> to vector<8x16x128xf32>
    %c0_4 = arith.constant 0 : index
    %c0_5 = arith.constant 0 : index
    %c0_6 = arith.constant 0 : index
    %c0_7 = arith.constant 0 : index
    %19 = vector.load %arg5[%c0_4, %c0_5, %c0_6, %c0_7] : memref<1x8x16x128xf32, #tpu.memory_space<vmem>>, vector<1x8x16x128xf32>
    %20 = vector.shape_cast %19 : vector<1x8x16x128xf32> to vector<8x16x128xf32>
    %21 = vector.shape_cast %18 : vector<8x16x128xf32> to vector<1x8x16x128xf32>
    tpu.vector_store %arg5[%c0_4, %c0_5, %c0_6, %c0_7], %21 {strides = array<i32>} : memref<1x8x16x128xf32, #tpu.memory_space<vmem>>, vector<1x8x16x128xf32>,
    %c0_i32 = arith.constant 0 : i32
    %22 = arith.cmpi eq, %arg2, %c0_i32 : i32
    %23 = arith.extui %22 : i1 to i32
    %c0_i32_8 = arith.constant 0 : i32
    %24 = arith.cmpi ne, %23, %c0_i32_8 : i32
    scf.if %24 {
      %cst_22 = arith.constant 0.000000e+00 : f32
      %42 = vector.broadcast %cst_22 : f32 to vector<1x2x128xf32>
      %c0_23 = arith.constant 0 : index
      %c0_24 = arith.constant 0 : index
      %c0_25 = arith.constant 0 : index
      %43 = vector.load %arg6[%c0_23, %c0_24, %c0_25] : memref<1x2x128xf32, #tpu.memory_space<vmem>>, vector<1x2x128xf32>
      tpu.vector_store %arg6[%c0_23, %c0_24, %c0_25], %42 {strides = array<i32>} : memref<1x2x128xf32, #tpu.memory_space<vmem>>, vector<1x2x128xf32>,
    } else {
    }
    %c0_9 = arith.constant 0 : index
    %c0_10 = arith.constant 0 : index
    %c0_11 = arith.constant 0 : index
    %25 = vector.load %arg6[%c0_9, %c0_10, %c0_11] : memref<1x2x128xf32, #tpu.memory_space<vmem>>, vector<1x1x128xf32>
    %26 = vector.shape_cast %25 : vector<1x1x128xf32> to vector<1x128xf32>
    %cst_12 = arith.constant dense<0.000000e+00> : vector<128xf32>
    %27 = vector.multi_reduction <add>, %17, %cst_12 [0] : vector<128x128xf32> to vector<128xf32>
    %28 = vector.shape_cast %27 : vector<128xf32> to vector<1x128xf32>
    %29 = arith.addf %26, %28 : vector<1x128xf32>
    %c0_13 = arith.constant 0 : index
    %c0_14 = arith.constant 0 : index
    %c0_15 = arith.constant 0 : index
    %30 = vector.load %arg6[%c0_13, %c0_14, %c0_15] : memref<1x2x128xf32, #tpu.memory_space<vmem>>, vector<1x1x128xf32>
    %31 = vector.shape_cast %30 : vector<1x1x128xf32> to vector<1x128xf32>
    %32 = vector.shape_cast %29 : vector<1x128xf32> to vector<1x1x128xf32>
    tpu.vector_store %arg6[%c0_13, %c0_14, %c0_15], %32 {strides = array<i32>} : memref<1x2x128xf32, #tpu.memory_space<vmem>>, vector<1x1x128xf32>,
    %c0_16 = arith.constant 0 : index
    %c1 = arith.constant 1 : index
    %c0_17 = arith.constant 0 : index
    %33 = vector.load %arg6[%c0_16, %c1, %c0_17] : memref<1x2x128xf32, #tpu.memory_space<vmem>>, vector<1x1x128xf32>
    %34 = vector.shape_cast %33 : vector<1x1x128xf32> to vector<1x128xf32>
    %35 = arith.mulf %17, %17 : vector<128x128xf32>
    %cst_18 = arith.constant dense<0.000000e+00> : vector<128xf32>
    %36 = vector.multi_reduction <add>, %35, %cst_18 [0] : vector<128x128xf32> to vector<128xf32>
    %37 = vector.shape_cast %36 : vector<128xf32> to vector<1x128xf32>
    %38 = arith.addf %34, %37 : vector<1x128xf32>
    %c0_19 = arith.constant 0 : index
    %c1_20 = arith.constant 1 : index
    %c0_21 = arith.constant 0 : index
    %39 = vector.load %arg6[%c0_19, %c1_20, %c0_21] : memref<1x2x128xf32, #tpu.memory_space<vmem>>, vector<1x1x128xf32>
    %40 = vector.shape_cast %39 : vector<1x1x128xf32> to vector<1x128xf32>
    %41 = vector.shape_cast %38 : vector<1x128xf32> to vector<1x1x128xf32>
    tpu.vector_store %arg6[%c0_19, %c1_20, %c0_21], %41 {strides = array<i32>} : memref<1x2x128xf32, #tpu.memory_space<vmem>>, vector<1x1x128xf32>,
    return
  }
  func.func @transform_0(%arg0: i32, %arg1: i32, %arg2: i32) -> (i32, i32, i32, i32) {
    %c0_i32 = arith.constant 0 : i32
    %c0_i32_0 = arith.constant 0 : i32
    %c0_i32_1 = arith.constant 0 : i32
    %c0_i32_2 = arith.constant 0 : i32
    return %arg0, %c0_i32, %c0_i32_0, %c0_i32_1 : i32, i32, i32, i32
  }
  func.func @transform_1(%arg0: i32, %arg1: i32, %arg2: i32) -> (i32, i32) {
    %c0_i32 = arith.constant 0 : i32
    %c0_i32_0 = arith.constant 0 : i32
    return %c0_i32, %arg1 : i32, i32
  }
  func.func @transform_2(%arg0: i32, %arg1: i32, %arg2: i32) -> (i32, i32, i32, i32) {
    %c0_i32 = arith.constant 0 : i32
    %c0_i32_0 = arith.constant 0 : i32
    return %arg0, %arg2, %c0_i32, %arg1 : i32, i32, i32, i32
  }
  func.func @transform_3(%arg0: i32, %arg1: i32, %arg2: i32) -> (i32, i32, i32) {
    %c0_i32 = arith.constant 0 : i32
    %c0_i32_0 = arith.constant 0 : i32
    return %arg0, %c0_i32, %arg1 : i32, i32, i32
  }
}

</mosaic_0001>

<llo_original>
// kernel: basic_conv_in_2d.3
$region0: #{basic_conv_in_2d.3}
  #allocation0 [shape = 'u32[]', space=smem, size = 0x4, offset = 0x4, fixed_abs, tag = 'smem constant byte address 0x4 - core index']
  #allocation1 [shape = 'u32[144,128]{1,0:T(1,128)}', space=vmem, size = 0x12000, scoped, tag = 'internal scratch']
  %s0 = inlined_call_operand.vmem [shape: f32[2,16,16,128], index: 0, kind: input, shape index: {}]
  %s1 = inlined_call_operand.vmem [shape: f32[2,2,128], index: 1, kind: input, shape index: {}]
  %s2 = inlined_call_operand.vmem [shape: f32[2,16,16,128], index: 2, kind: output, shape index: {}]
  %s3 = sld [smem:[#allocation0]]
  $region41: #{basic_conv_in_2d.3} parent=0
    _
  %s5 = ssub.s32 1, %s3
  %s6 = scalar_select 0, %s5, %s3
  loop: start=0, step=1, limit=6
  $region2: #{basic_conv_in_2d.3} parent=0 // loop_pre_header
    _
  $region3: #{basic_conv_in_2d.3} parent=0 // loop_header
    %s8 = sphi 0, %s12
    %p9 = scmp.ge.s32.totalorder %s8, 6
    %s15 = sphi 0, %s34
    %s16 = sphi 0, %s30
    %s17 = sphi 0, %s26
    %s18 = sphi 0, %s15
    %s19 = sphi 0, %s16
    %s20 = sphi 0, %s17
    %s21 = sphi 0, %s18
    %s22 = sphi 0, %s19
    %s23 = sphi 0, %s20
    %s41 = sphi 0, %s43
    %s44 = sphi 0, %s41
    %s45 = sphi 0, %s44
    %s61 = sphi 0, %s45
    %s69 = sphi 0, %s71
    %s72 = sphi 0, %s69
    %s73 = sphi 0, %s72
    %s89 = sphi 0, %s73
    %s99 = sphi 0, %s101
    %s102 = sphi 0, %s99
    %s103 = sphi 0, %s102
    %s119 = sphi 0, %s103
  $region4: #{basic_conv_in_2d.3} parent=0 // loop_header_branch
    %11 = sbr.rel (%p9) target = $region8
  $region5: #{basic_conv_in_2d.3} parent=0 // loop_body
    %s13 = ssub.s32 %s8, 1
    %s14 = ssub.s32 %s8, 2
    %s24 = sadd.s32 1, %s17
    %p25 = scmp.ge.s32.totalorder %s24, 2
    %s26 = scalar_select %p25, 0, %s24
    %s27 = sadd.s32 1, %s16
    %s28 = scalar_select %p25, %s27, %s16
    %p29 = scmp.ge.s32.totalorder %s28, 1
    %s30 = scalar_select %p29, 0, %s28
    %s31 = sadd.s32 1, %s15
    %s32 = scalar_select %p29, %s31, %s15
    %p33 = scmp.ge.s32.totalorder %s32, 2
    %s34 = scalar_select %p33, 0, %s32
    %s35 = ssub.s32 %s15, %s34
    %s36 = ssub.s32 %s17, %s26
    %s37 = sor.u32 %s35, %s36
    %s38 = ssub.s32 %s16, %s30
    %s39 = sor.u32 %s37, %s38
    %p40 = scmp.eq.s32.totalorder %s39, 0
    %s42 = sadd.s32 %s41, 1
    %s43 = scalar_select %p40, %s41, %s42
    %p46 = pneg %p40
    %p47 = scmp.eq.s32.totalorder %s8, 3
    %p48 = por %p46, %p47
    %p49 = scmp.ne.s32.totalorder %s41, %s44
    %p50 = scmp.eq.s32.totalorder %s8, 0
    %p51 = por %p49, %p50
    %p52 = scmp.ne.s32.totalorder %s41, %s44
    %p53 = scmp.eq.s32.totalorder %s13, 3
    %p54 = por %p52, %p53
    %p55 = scmp.ne.s32.totalorder %s44, %s45
    %p56 = scmp.eq.s32.totalorder %s13, 0
    %p57 = por %p55, %p56
    %p58 = scmp.ne.s32.totalorder %s44, %s45
    %p59 = scmp.eq.s32.totalorder %s14, 3
    %p60 = por %p58, %p59
    %p62 = scmp.ne.s32.totalorder %s45, %s61
    %p63 = scmp.eq.s32.totalorder %s14, 0
    %p64 = por %p62, %p63
    %s65 = ssub.s32 %s15, %s34
    %s66 = ssub.s32 %s16, %s30
    %s67 = sor.u32 %s65, %s66
    %p68 = scmp.eq.s32.totalorder %s67, 0
    %s70 = sadd.s32 %s69, 1
    %s71 = scalar_select %p68, %s69, %s70
    %p74 = pneg %p68
    %p75 = scmp.eq.s32.totalorder %s8, 3
    %p76 = por %p74, %p75
    %p77 = scmp.ne.s32.totalorder %s69, %s72
    %p78 = scmp.eq.s32.totalorder %s8, 0
    %p79 = por %p77, %p78
    %p80 = scmp.ne.s32.totalorder %s69, %s72
    %p81 = scmp.eq.s32.totalorder %s13, 3
    %p82 = por %p80, %p81
    %p83 = scmp.ne.s32.totalorder %s72, %s73
    %p84 = scmp.eq.s32.totalorder %s13, 0
    %p85 = por %p83, %p84
    %p86 = scmp.ne.s32.totalorder %s72, %s73
    %p87 = scmp.eq.s32.totalorder %s14, 3
    %p88 = por %p86, %p87
    %p90 = scmp.ne.s32.totalorder %s73, %s89
    %p91 = scmp.eq.s32.totalorder %s14, 0
    %p92 = por %p90, %p91
    %s93 = ssub.s32 %s15, %s34
    %s94 = ssub.s32 %s17, %s26
    %s95 = sor.u32 %s93, %s94
    %s96 = ssub.s32 %s16, %s30
    %s97 = sor.u32 %s95, %s96
    %p98 = scmp.eq.s32.totalorder %s97, 0
    %s100 = sadd.s32 %s99, 1
    %s101 = scalar_select %p98, %s99, %s100
    %p104 = pneg %p98
    %p105 = scmp.eq.s32.totalorder %s8, 3
    %p106 = por %p104, %p105
    %p107 = scmp.ne.s32.totalorder %s99, %s102
    %p108 = scmp.eq.s32.totalorder %s8, 0
    %p109 = por %p107, %p108
    %p110 = scmp.ne.s32.totalorder %s99, %s102
    %p111 = scmp.eq.s32.totalorder %s13, 3
    %p112 = por %p110, %p111
    %p113 = scmp.ne.s32.totalorder %s102, %s103
    %p114 = scmp.eq.s32.totalorder %s13, 0
    %p115 = por %p113, %p114
    %p116 = scmp.ne.s32.totalorder %s102, %s103
    %p117 = scmp.eq.s32.totalorder %s14, 3
    %p118 = por %p116, %p117
    %p120 = scmp.ne.s32.totalorder %s103, %s119
    %p121 = scmp.eq.s32.totalorder %s14, 0
    %p122 = por %p120, %p121
    %p123 = scmp.le.s32.totalorder 1, %s8
    %p124 = scmp.lt.s32.totalorder %s8, 5
    %p125 = pnand %p123, %p124
    %p126 = pneg %p125
    // Predicated region
    $region9: #{basic_conv_in_2d.3} parent=5 // pred_check
      _
    $region10: #{basic_conv_in_2d.3} parent=5 // pred_check_branch
      %128 = sbr.rel (%p125) target = $region12
    $region11: #{basic_conv_in_2d.3} parent=5 // pred_region
      %s129 = ssub.s32 %s8, 1
    $region12: #{basic_conv_in_2d.3} parent=5 // pred_fallthru
      _
    %p130 = scmp.lt.s32.totalorder %s8, 4
    // Predicated region
    $region13: #{basic_conv_in_2d.3} parent=5 // pred_check
      %p131 = pneg %p130
    $region14: #{basic_conv_in_2d.3} parent=5 // pred_check_branch
      %133 = sbr.rel (%p131) target = $region16
    $region15: #{basic_conv_in_2d.3} parent=5 // pred_region
      // Predicated region
      $region17: #{basic_conv_in_2d.3} parent=15 // pred_check
        %p134 = pneg %p51
      $region18: #{basic_conv_in_2d.3} parent=15 // pred_check_branch
        %136 = sbr.rel (%p134) target = $region20
      $region19: #{basic_conv_in_2d.3} parent=15 // pred_region
        %s137 = smul.u32 8, %s17
        %p138 = scmp.lt.s32.totalorder %s15, 1
        %s139 = scalar_select %p138, %s15, 1
        %p140 = scmp.lt.s32.totalorder %s137, 15
        %s141 = scalar_select %p140, %s137, 15
        %p142 = scmp.lt.s32.totalorder %s16, 0
        %s143 = scalar_select %p142, %s16, 0
        %s144 = smul.addr %s141, 2
        %s145 = sadd.s32 %s143, %s144
        %s146 = smul.addr %s139, 32
        %s147 = sadd.s32 %s145, %s146
        %s148 = smul.addr %s147, 8
        %s149 = scalar_lea.vmem %s0, %s148
        %s150 = smul.u32 8, %s17
      $region20: #{basic_conv_in_2d.3} parent=15 // pred_fallthru
        _
      // Predicated region
      $region21: #{basic_conv_in_2d.3} parent=15 // pred_check
        %p151 = pneg %p79
      $region22: #{basic_conv_in_2d.3} parent=15 // pred_check_branch
        %153 = sbr.rel (%p151) target = $region24
      $region23: #{basic_conv_in_2d.3} parent=15 // pred_region
        %p154 = scmp.lt.s32.totalorder %s15, 1
        %s155 = scalar_select %p154, %s15, 1
        %p156 = scmp.lt.s32.totalorder %s16, 0
        %s157 = scalar_select %p156, %s16, 0
        %s158 = sadd.s32 %s157, %s155
        %s159 = smul.addr %s158, 2
        %s160 = scalar_lea.vmem %s1, %s159
      $region24: #{basic_conv_in_2d.3} parent=15 // pred_fallthru
        _
    $region16: #{basic_conv_in_2d.3} parent=5 // pred_fallthru
      _
    %p161 = scmp.le.s32.totalorder 1, %s8
    %p162 = scmp.lt.s32.totalorder %s8, 5
    %p163 = pnand %p161, %p162
    %p164 = pneg %p163
    // Predicated region
    $region25: #{basic_conv_in_2d.3} parent=5 // pred_check
      _
    $region26: #{basic_conv_in_2d.3} parent=5 // pred_check_branch
      %166 = sbr.rel (%p163) target = $region28
    $region27: #{basic_conv_in_2d.3} parent=5 // pred_region
      %s167 = ssub.s32 %s8, 1
      %s168 = smul.u32 8, %s20
      %p169 = scmp.lt.s32.totalorder %s18, 1
      %s170 = scalar_select %p169, %s18, 1
      %p171 = scmp.lt.s32.totalorder %s168, 15
      %s172 = scalar_select %p171, %s168, 15
      %p173 = scmp.lt.s32.totalorder %s19, 0
      %s174 = scalar_select %p173, %s19, 0
      %s175 = smul.addr %s172, 2
      %s176 = sadd.s32 %s174, %s175
      %s177 = smul.addr %s170, 32
      %s178 = sadd.s32 %s176, %s177
      %s179 = smul.addr %s178, 8
      %s180 = scalar_lea.vmem %s0, %s179
      %p181 = pneg %p57
      %p182 = pneg %p54
      %p183 = scmp.lt.s32.totalorder %s18, 1
      %s184 = scalar_select %p183, %s18, 1
      %p185 = scmp.lt.s32.totalorder %s19, 0
      %s186 = scalar_select %p185, %s19, 0
      %s187 = sadd.s32 %s186, %s184
      %s188 = smul.addr %s187, 2
      %s189 = scalar_lea.vmem %s1, %s188
      %p190 = pneg %p85
      %p191 = pneg %p82
      %p192 = pneg %p115
      %p193 = pneg %p112
      %s194 = smul.u32 8, %s20
      %p195 = scmp.lt.s32.totalorder %s18, 1
      %s196 = scalar_select %p195, %s18, 1
      %p197 = scmp.lt.s32.totalorder %s194, 15
      %s198 = scalar_select %p197, %s194, 15
      %p199 = scmp.lt.s32.totalorder %s19, 0
      %s200 = scalar_select %p199, %s19, 0
      %s201 = smul.addr %s198, 2
      %s202 = sadd.s32 %s200, %s201
      %s203 = smul.addr %s196, 32
      %s204 = sadd.s32 %s202, %s203
      %s205 = smul.addr %s204, 8
      %s206 = scalar_lea.vmem %s2, %s205
      %s207 = smul.u32 8, %s20
      %p208 = scmp.lt.s32.totalorder %s18, 1
      %s209 = scalar_select %p208, %s18, 1
      %p210 = scmp.lt.s32.totalorder %s207, 15
      %s211 = scalar_select %p210, %s207, 15
      %p212 = scmp.lt.s32.totalorder %s19, 0
      %s213 = scalar_select %p212, %s19, 0
      %s214 = smul.addr %s211, 2
      %s215 = sadd.s32 %s213, %s214
      %s216 = smul.addr %s209, 32
      %s217 = sadd.s32 %s215, %s216
      %s218 = smul.addr %s217, 8
      %s219 = scalar_lea.vmem %s0, %s218
      %s220 = smul.u32 8, %s20
      %p221 = scmp.lt.s32.totalorder %s18, 1
      %s222 = scalar_select %p221, %s18, 1
      %p223 = scmp.lt.s32.totalorder %s19, 0
      %s224 = scalar_select %p223, %s19, 0
      %s225 = sadd.s32 %s224, %s222
      %s226 = smul.addr %s225, 2
      %s227 = scalar_lea.vmem %s1, %s226
      %s228 = smul.u32 8, %s20
      %p229 = scmp.lt.s32.totalorder %s18, 1
      %s230 = scalar_select %p229, %s18, 1
      %p231 = scmp.lt.s32.totalorder %s228, 15
      %s232 = scalar_select %p231, %s228, 15
      %p233 = scmp.lt.s32.totalorder %s19, 0
      %s234 = scalar_select %p233, %s19, 0
      %s235 = smul.addr %s232, 2
      %s236 = sadd.s32 %s234, %s235
      %s237 = smul.addr %s230, 32
      %s238 = sadd.s32 %s236, %s237
      %s239 = smul.addr %s238, 8
      %s240 = scalar_lea.vmem %s2, %s239
      %s241 = smul.u32 8, %s20
      %v242 = vld [vmem:[%s219] sm:$0xff]
      %v243 = vld [vmem:[%s219 + $0x8] sm:$0xff]
      %v244 = vld [vmem:[%s219 + $0x10] sm:$0xff]
      %v245 = vld [vmem:[%s219 + $0x18] sm:$0xff]
      %v246 = vld [vmem:[%s219 + $0x20] sm:$0xff]
      %v247 = vld [vmem:[%s219 + $0x28] sm:$0xff]
      %v248 = vld [vmem:[%s219 + $0x30] sm:$0xff]
      %v249 = vld [vmem:[%s219 + $0x38] sm:$0xff]
      %v250 = vld [vmem:[%s219 + $0x40] sm:$0xff]
      %v251 = vld [vmem:[%s219 + $0x48] sm:$0xff]
      %v252 = vld [vmem:[%s219 + $0x50] sm:$0xff]
      %v253 = vld [vmem:[%s219 + $0x58] sm:$0xff]
      %v254 = vld [vmem:[%s219 + $0x60] sm:$0xff]
      %v255 = vld [vmem:[%s219 + $0x68] sm:$0xff]
      %v256 = vld [vmem:[%s219 + $0x70] sm:$0xff]
      %v257 = vld [vmem:[%s219 + $0x78] sm:$0xff]
      %v258 = vld [vmem:[%s227] sm:$0x3]
      %v259 = vmul.f32 %v258, 0.00390625
      %v260 = vmul.f32 %v259, %v259
      %v262 = vrot.slane %v260, 7
      %v264 = vsub.f32 %v259, %v262
      %v265 = vmax.f32 %v264, 0.0
      %v266 = vadd.f32 %v265, 1e-05
      %v267 = vrsqrt.pop %v266
      %v268 = vlaneseq
      %v269 = vshrl.u32 %v268, 7
      %v270 = vsub.s32 0, %v269
      %v271 = vrot.slane %v259, %v270
      %v272 = vsub.f32 %v242, %v271
      %v273 = vsub.f32 %v243, %v271
      %v274 = vsub.f32 %v244, %v271
      %v275 = vsub.f32 %v245, %v271
      %v276 = vsub.f32 %v246, %v271
      %v277 = vsub.f32 %v247, %v271
      %v278 = vsub.f32 %v248, %v271
      %v279 = vsub.f32 %v249, %v271
      %v280 = vsub.f32 %v250, %v271
      %v281 = vsub.f32 %v251, %v271
      %v282 = vsub.f32 %v252, %v271
      %v283 = vsub.f32 %v253, %v271
      %v284 = vsub.f32 %v254, %v271
      %v285 = vsub.f32 %v255, %v271
      %v286 = vsub.f32 %v256, %v271
      %v287 = vsub.f32 %v257, %v271
      %v288 = vlaneseq
      %v289 = vshrl.u32 %v288, 7
      %v290 = vsub.s32 1, %v289
      %v291 = vrot.slane %v267, %v290
      %v292 = vmul.f32 %v272, %v291
      %v293 = vmul.f32 %v273, %v291
      %v294 = vmul.f32 %v274, %v291
      %v295 = vmul.f32 %v275, %v291
      %v296 = vmul.f32 %v276, %v291
      %v297 = vmul.f32 %v277, %v291
      %v298 = vmul.f32 %v278, %v291
      %v299 = vmul.f32 %v279, %v291
      %v300 = vmul.f32 %v280, %v291
      %v301 = vmul.f32 %v281, %v291
      %v302 = vmul.f32 %v282, %v291
      %v303 = vmul.f32 %v283, %v291
      %v304 = vmul.f32 %v284, %v291
      %v305 = vmul.f32 %v285, %v291
      %v306 = vmul.f32 %v286, %v291
      %v307 = vmul.f32 %v287, %v291
      %vm308 = vcmp.ge.f32.partialorder %v292, 0.0
      %vm309 = vcmp.ge.f32.partialorder %v293, 0.0
      %vm310 = vcmp.ge.f32.partialorder %v294, 0.0
      %vm311 = vcmp.ge.f32.partialorder %v295, 0.0
      %vm312 = vcmp.ge.f32.partialorder %v296, 0.0
      %vm313 = vcmp.ge.f32.partialorder %v297, 0.0
      %vm314 = vcmp.ge.f32.partialorder %v298, 0.0
      %vm315 = vcmp.ge.f32.partialorder %v299, 0.0
      %vm316 = vcmp.ge.f32.partialorder %v300, 0.0
      %vm317 = vcmp.ge.f32.partialorder %v301, 0.0
      %vm318 = vcmp.ge.f32.partialorder %v302, 0.0
      %vm319 = vcmp.ge.f32.partialorder %v303, 0.0
      %vm320 = vcmp.ge.f32.partialorder %v304, 0.0
      %vm321 = vcmp.ge.f32.partialorder %v305, 0.0
      %vm322 = vcmp.ge.f32.partialorder %v306, 0.0
      %vm323 = vcmp.ge.f32.partialorder %v307, 0.0
      %v324 = vmul.f32 %v292, 0.01
      %v325 = vmul.f32 %v293, 0.01
      %v326 = vmul.f32 %v294, 0.01
      %v327 = vmul.f32 %v295, 0.01
      %v328 = vmul.f32 %v296, 0.01
      %v329 = vmul.f32 %v297, 0.01
      %v330 = vmul.f32 %v298, 0.01
      %v331 = vmul.f32 %v299, 0.01
      %v332 = vmul.f32 %v300, 0.01
      %v333 = vmul.f32 %v301, 0.01
      %v334 = vmul.f32 %v302, 0.01
      %v335 = vmul.f32 %v303, 0.01
      %v336 = vmul.f32 %v304, 0.01
      %v337 = vmul.f32 %v305, 0.01
      %v338 = vmul.f32 %v306, 0.01
      %v339 = vmul.f32 %v307, 0.01
      %v340 = vsel %vm308, %v292, %v324
      %v341 = vsel %vm309, %v293, %v325
      %v342 = vsel %vm310, %v294, %v326
      %v343 = vsel %vm311, %v295, %v327
      %v344 = vsel %vm312, %v296, %v328
      %v345 = vsel %vm313, %v297, %v329
      %v346 = vsel %vm314, %v298, %v330
      %v347 = vsel %vm315, %v299, %v331
      %v348 = vsel %vm316, %v300, %v332
      %v349 = vsel %vm317, %v301, %v333
      %v350 = vsel %vm318, %v302, %v334
      %v351 = vsel %vm319, %v303, %v335
      %v352 = vsel %vm320, %v304, %v336
      %v353 = vsel %vm321, %v305, %v337
      %v354 = vsel %vm322, %v306, %v338
      %v355 = vsel %vm323, %v307, %v339
      %356 = vst [vmem:[%s240] sm:$0xff] %v340
      %357 = vst [vmem:[%s240 + $0x8] sm:$0xff] %v341
      %358 = vst [vmem:[%s240 + $0x10] sm:$0xff] %v342
      %359 = vst [vmem:[%s240 + $0x18] sm:$0xff] %v343
      %360 = vst [vmem:[%s240 + $0x20] sm:$0xff] %v344
      %361 = vst [vmem:[%s240 + $0x28] sm:$0xff] %v345
      %362 = vst [vmem:[%s240 + $0x30] sm:$0xff] %v346
      %363 = vst [vmem:[%s240 + $0x38] sm:$0xff] %v347
      %364 = vst [vmem:[%s240 + $0x40] sm:$0xff] %v348
      %365 = vst [vmem:[%s240 + $0x48] sm:$0xff] %v349
      %366 = vst [vmem:[%s240 + $0x50] sm:$0xff] %v350
      %367 = vst [vmem:[%s240 + $0x58] sm:$0xff] %v351
      %368 = vst [vmem:[%s240 + $0x60] sm:$0xff] %v352
      %369 = vst [vmem:[%s240 + $0x68] sm:$0xff] %v353
      %370 = vst [vmem:[%s240 + $0x70] sm:$0xff] %v354
      %371 = vst [vmem:[%s240 + $0x78] sm:$0xff] %v355
      %s372 = smul.u32 8, %s20
      %p373 = scmp.lt.s32.totalorder %s18, 1
      %s374 = scalar_select %p373, %s18, 1
      %p375 = scmp.lt.s32.totalorder %s372, 15
      %s376 = scalar_select %p375, %s372, 15
      %p377 = scmp.lt.s32.totalorder %s19, 0
      %s378 = scalar_select %p377, %s19, 0
      %s379 = smul.addr %s376, 2
      %s380 = sadd.s32 %s378, %s379
      %s381 = smul.addr %s374, 32
      %s382 = sadd.s32 %s380, %s381
      %s383 = smul.addr %s382, 8
      %s384 = scalar_lea.vmem %s2, %s383
      // Predicated region
      $region29: #{basic_conv_in_2d.3} parent=27 // pred_check
        %p385 = pneg %p112
      $region30: #{basic_conv_in_2d.3} parent=27 // pred_check_branch
        %387 = sbr.rel (%p385) target = $region32
      $region31: #{basic_conv_in_2d.3} parent=27 // pred_region
        %s388 = smul.u32 8, %s20
      $region32: #{basic_conv_in_2d.3} parent=27 // pred_fallthru
        _
    $region28: #{basic_conv_in_2d.3} parent=5 // pred_fallthru
      _
    %p389 = scmp.le.s32.totalorder 2, %s8
    // Predicated region
    $region33: #{basic_conv_in_2d.3} parent=5 // pred_check
      %p390 = pneg %p389
    $region34: #{basic_conv_in_2d.3} parent=5 // pred_check_branch
      %392 = sbr.rel (%p390) target = $region36
    $region35: #{basic_conv_in_2d.3} parent=5 // pred_region
      %s393 = ssub.s32 %s8, 2
      // Predicated region
      $region37: #{basic_conv_in_2d.3} parent=35 // pred_check
        %p394 = pneg %p118
      $region38: #{basic_conv_in_2d.3} parent=35 // pred_check_branch
        %396 = sbr.rel (%p394) target = $region40
      $region39: #{basic_conv_in_2d.3} parent=35 // pred_region
        %s397 = smul.u32 8, %s23
        %p398 = scmp.lt.s32.totalorder %s21, 1
        %s399 = scalar_select %p398, %s21, 1
        %p400 = scmp.lt.s32.totalorder %s397, 15
        %s401 = scalar_select %p400, %s397, 15
        %p402 = scmp.lt.s32.totalorder %s22, 0
        %s403 = scalar_select %p402, %s22, 0
        %s404 = smul.addr %s401, 2
        %s405 = sadd.s32 %s403, %s404
        %s406 = smul.addr %s399, 32
        %s407 = sadd.s32 %s405, %s406
        %s408 = smul.addr %s407, 8
        %s409 = scalar_lea.vmem %s2, %s408
      $region40: #{basic_conv_in_2d.3} parent=35 // pred_fallthru
        _
    $region36: #{basic_conv_in_2d.3} parent=5 // pred_fallthru
      _
  $region6: #{basic_conv_in_2d.3} parent=0 // loop_footer
    %s12 = sadd.s32 1, %s8
  $region7: #{basic_conv_in_2d.3} parent=0 // loop_footer_branch
    %7 = sbr.rel target = $region3
  $region8: #{basic_conv_in_2d.3} parent=0 // loop_exit
    _

// kernel: basic_conv_in_2d.2
$region0: #{basic_conv_in_2d.2}
  #allocation0 [shape = 'u32[]', space=smem, size = 0x4, offset = 0x4, fixed_abs, tag = 'smem constant byte address 0x4 - core index']
  #allocation1 [shape = 'u32[144,128]{1,0:T(1,128)}', space=vmem, size = 0x12000, scoped, tag = 'internal scratch']
  %s0 = inlined_call_operand.vmem [shape: bf16[2,18,18,4], index: 0, kind: input, shape index: {}]
  %s1 = inlined_call_operand.vmem [shape: bf16[36,128], index: 1, kind: input, shape index: {}]
  %s2 = inlined_call_operand.vmem [shape: f32[2,16,16,128], index: 2, kind: output, shape index: {0}]
  %s3 = inlined_call_operand.vmem [shape: f32[2,2,128], index: 3, kind: output, shape index: {1}]
  %4 = xla_tuple %s2, %s3
  %s5 = sld [smem:[#allocation0]]
  $region53: #{basic_conv_in_2d.2} parent=0
    _
  %s7 = ssub.s32 1, %s5
  %s8 = scalar_select 0, %s7, %s5
  loop: start=0, step=1, limit=6
  $region2: #{basic_conv_in_2d.2} parent=0 // loop_pre_header
    _
  $region3: #{basic_conv_in_2d.2} parent=0 // loop_header
    %s10 = sphi 0, %s14
    %p11 = scmp.ge.s32.totalorder %s10, 6
    %s17 = sphi 0, %s36
    %s18 = sphi 0, %s32
    %s19 = sphi 0, %s28
    %s20 = sphi 0, %s17
    %s21 = sphi 0, %s18
    %s22 = sphi 0, %s19
    %s23 = sphi 0, %s20
    %s24 = sphi 0, %s21
    %s25 = sphi 0, %s22
    %s39 = sphi 0, %s41
    %s42 = sphi 0, %s39
    %s43 = sphi 0, %s42
    %s59 = sphi 0, %s43
    %s65 = sphi 0, %s67
    %s68 = sphi 0, %s65
    %s69 = sphi 0, %s68
    %s85 = sphi 0, %s69
    %s95 = sphi 0, %s97
    %s98 = sphi 0, %s95
    %s99 = sphi 0, %s98
    %s115 = sphi 0, %s99
    %s123 = sphi 0, %s125
    %s126 = sphi 0, %s123
    %s127 = sphi 0, %s126
    %s143 = sphi 0, %s127
  $region4: #{basic_conv_in_2d.2} parent=0 // loop_header_branch
    %13 = sbr.rel (%p11) target = $region8
  $region5: #{basic_conv_in_2d.2} parent=0 // loop_body
    %s15 = ssub.s32 %s10, 1
    %s16 = ssub.s32 %s10, 2
    %s26 = sadd.s32 1, %s19
    %p27 = scmp.ge.s32.totalorder %s26, 2
    %s28 = scalar_select %p27, 0, %s26
    %s29 = sadd.s32 1, %s18
    %s30 = scalar_select %p27, %s29, %s18
    %p31 = scmp.ge.s32.totalorder %s30, 1
    %s32 = scalar_select %p31, 0, %s30
    %s33 = sadd.s32 1, %s17
    %s34 = scalar_select %p31, %s33, %s17
    %p35 = scmp.ge.s32.totalorder %s34, 2
    %s36 = scalar_select %p35, 0, %s34
    %s37 = ssub.s32 %s17, %s36
    %p38 = scmp.eq.s32.totalorder %s37, 0
    %s40 = sadd.s32 %s39, 1
    %s41 = scalar_select %p38, %s39, %s40
    %p44 = pneg %p38
    %p45 = scmp.eq.s32.totalorder %s10, 3
    %p46 = por %p44, %p45
    %p47 = scmp.ne.s32.totalorder %s39, %s42
    %p48 = scmp.eq.s32.totalorder %s10, 0
    %p49 = por %p47, %p48
    %p50 = scmp.ne.s32.totalorder %s39, %s42
    %p51 = scmp.eq.s32.totalorder %s15, 3
    %p52 = por %p50, %p51
    %p53 = scmp.ne.s32.totalorder %s42, %s43
    %p54 = scmp.eq.s32.totalorder %s15, 0
    %p55 = por %p53, %p54
    %p56 = scmp.ne.s32.totalorder %s42, %s43
    %p57 = scmp.eq.s32.totalorder %s16, 3
    %p58 = por %p56, %p57
    %p60 = scmp.ne.s32.totalorder %s43, %s59
    %p61 = scmp.eq.s32.totalorder %s16, 0
    %p62 = por %p60, %p61
    %s63 = ssub.s32 %s18, %s32
    %p64 = scmp.eq.s32.totalorder %s63, 0
    %s66 = sadd.s32 %s65, 1
    %s67 = scalar_select %p64, %s65, %s66
    %p70 = pneg %p64
    %p71 = scmp.eq.s32.totalorder %s10, 3
    %p72 = por %p70, %p71
    %p73 = scmp.ne.s32.totalorder %s65, %s68
    %p74 = scmp.eq.s32.totalorder %s10, 0
    %p75 = por %p73, %p74
    %p76 = scmp.ne.s32.totalorder %s65, %s68
    %p77 = scmp.eq.s32.totalorder %s15, 3
    %p78 = por %p76, %p77
    %p79 = scmp.ne.s32.totalorder %s68, %s69
    %p80 = scmp.eq.s32.totalorder %s15, 0
    %p81 = por %p79, %p80
    %p82 = scmp.ne.s32.totalorder %s68, %s69
    %p83 = scmp.eq.s32.totalorder %s16, 3
    %p84 = por %p82, %p83
    %p86 = scmp.ne.s32.totalorder %s69, %s85
    %p87 = scmp.eq.s32.totalorder %s16, 0
    %p88 = por %p86, %p87
    %s89 = ssub.s32 %s17, %s36
    %s90 = ssub.s32 %s19, %s28
    %s91 = sor.u32 %s89, %s90
    %s92 = ssub.s32 %s18, %s32
    %s93 = sor.u32 %s91, %s92
    %p94 = scmp.eq.s32.totalorder %s93, 0
    %s96 = sadd.s32 %s95, 1
    %s97 = scalar_select %p94, %s95, %s96
    %p100 = pneg %p94
    %p101 = scmp.eq.s32.totalorder %s10, 3
    %p102 = por %p100, %p101
    %p103 = scmp.ne.s32.totalorder %s95, %s98
    %p104 = scmp.eq.s32.totalorder %s10, 0
    %p105 = por %p103, %p104
    %p106 = scmp.ne.s32.totalorder %s95, %s98
    %p107 = scmp.eq.s32.totalorder %s15, 3
    %p108 = por %p106, %p107
    %p109 = scmp.ne.s32.totalorder %s98, %s99
    %p110 = scmp.eq.s32.totalorder %s15, 0
    %p111 = por %p109, %p110
    %p112 = scmp.ne.s32.totalorder %s98, %s99
    %p113 = scmp.eq.s32.totalorder %s16, 3
    %p114 = por %p112, %p113
    %p116 = scmp.ne.s32.totalorder %s99, %s115
    %p117 = scmp.eq.s32.totalorder %s16, 0
    %p118 = por %p116, %p117
    %s119 = ssub.s32 %s17, %s36
    %s120 = ssub.s32 %s18, %s32
    %s121 = sor.u32 %s119, %s120
    %p122 = scmp.eq.s32.totalorder %s121, 0
    %s124 = sadd.s32 %s123, 1
    %s125 = scalar_select %p122, %s123, %s124
    %p128 = pneg %p122
    %p129 = scmp.eq.s32.totalorder %s10, 3
    %p130 = por %p128, %p129
    %p131 = scmp.ne.s32.totalorder %s123, %s126
    %p132 = scmp.eq.s32.totalorder %s10, 0
    %p133 = por %p131, %p132
    %p134 = scmp.ne.s32.totalorder %s123, %s126
    %p135 = scmp.eq.s32.totalorder %s15, 3
    %p136 = por %p134, %p135
    %p137 = scmp.ne.s32.totalorder %s126, %s127
    %p138 = scmp.eq.s32.totalorder %s15, 0
    %p139 = por %p137, %p138
    %p140 = scmp.ne.s32.totalorder %s126, %s127
    %p141 = scmp.eq.s32.totalorder %s16, 3
    %p142 = por %p140, %p141
    %p144 = scmp.ne.s32.totalorder %s127, %s143
    %p145 = scmp.eq.s32.totalorder %s16, 0
    %p146 = por %p144, %p145
    %p147 = scmp.le.s32.totalorder 1, %s10
    %p148 = scmp.lt.s32.totalorder %s10, 5
    %p149 = pnand %p147, %p148
    %p150 = pneg %p149
    // Predicated region
    $region9: #{basic_conv_in_2d.2} parent=5 // pred_check
      _
    $region10: #{basic_conv_in_2d.2} parent=5 // pred_check_branch
      %152 = sbr.rel (%p149) target = $region12
    $region11: #{basic_conv_in_2d.2} parent=5 // pred_region
      %s153 = ssub.s32 %s10, 1
      // Predicated region
      $region13: #{basic_conv_in_2d.2} parent=11 // pred_check
        %p154 = pneg %p81
      $region14: #{basic_conv_in_2d.2} parent=11 // pred_check_branch
        %156 = sbr.rel (%p154) target = $region16
      $region15: #{basic_conv_in_2d.2} parent=11 // pred_region
        %p157 = scmp.lt.s32.totalorder %s21, 0
        %s158 = scalar_select %p157, %s21, 0
        %s159 = smul.addr %s158, 4
        %s160 = scalar_lea.vmem %s1, %s159
      $region16: #{basic_conv_in_2d.2} parent=11 // pred_fallthru
        _
    $region12: #{basic_conv_in_2d.2} parent=5 // pred_fallthru
      _
    %p161 = scmp.lt.s32.totalorder %s10, 4
    // Predicated region
    $region17: #{basic_conv_in_2d.2} parent=5 // pred_check
      %p162 = pneg %p161
    $region18: #{basic_conv_in_2d.2} parent=5 // pred_check_branch
      %164 = sbr.rel (%p162) target = $region20
    $region19: #{basic_conv_in_2d.2} parent=5 // pred_region
      // Predicated region
      $region21: #{basic_conv_in_2d.2} parent=19 // pred_check
        %p165 = pneg %p49
      $region22: #{basic_conv_in_2d.2} parent=19 // pred_check_branch
        %167 = sbr.rel (%p165) target = $region24
      $region23: #{basic_conv_in_2d.2} parent=19 // pred_region
        %p168 = scmp.lt.s32.totalorder %s17, 1
        %s169 = scalar_select %p168, %s17, 1
        %s170 = smul.addr %s169, 54
        %s171 = smul.addr %s170, 4
        %s172 = scalar_lea.vmem %s0, %s171
      $region24: #{basic_conv_in_2d.2} parent=19 // pred_fallthru
        _
    $region20: #{basic_conv_in_2d.2} parent=5 // pred_fallthru
      _
    %p173 = scmp.le.s32.totalorder 1, %s10
    %p174 = scmp.lt.s32.totalorder %s10, 5
    %p175 = pnand %p173, %p174
    %p176 = pneg %p175
    // Predicated region
    $region25: #{basic_conv_in_2d.2} parent=5 // pred_check
      _
    $region26: #{basic_conv_in_2d.2} parent=5 // pred_check_branch
      %178 = sbr.rel (%p175) target = $region28
    $region27: #{basic_conv_in_2d.2} parent=5 // pred_region
      %s179 = ssub.s32 %s10, 1
      %p180 = scmp.lt.s32.totalorder %s20, 1
      %s181 = scalar_select %p180, %s20, 1
      %s182 = smul.addr %s181, 54
      %s183 = smul.addr %s182, 4
      %s184 = scalar_lea.vmem %s0, %s183
      %p185 = pneg %p55
      %p186 = pneg %p52
      %p187 = scmp.lt.s32.totalorder %s21, 0
      %s188 = scalar_select %p187, %s21, 0
      %s189 = smul.addr %s188, 4
      %s190 = scalar_lea.vmem %s1, %s189
      %p191 = pneg %p81
      %p192 = pneg %p78
      %p193 = pneg %p111
      %p194 = pneg %p108
      %s195 = smul.u32 8, %s22
      %p196 = scmp.lt.s32.totalorder %s20, 1
      %s197 = scalar_select %p196, %s20, 1
      %p198 = scmp.lt.s32.totalorder %s195, 15
      %s199 = scalar_select %p198, %s195, 15
      %p200 = scmp.lt.s32.totalorder %s21, 0
      %s201 = scalar_select %p200, %s21, 0
      %s202 = smul.addr %s199, 2
      %s203 = sadd.s32 %s201, %s202
      %s204 = smul.addr %s197, 32
      %s205 = sadd.s32 %s203, %s204
      %s206 = smul.addr %s205, 8
      %s207 = scalar_lea.vmem %s2, %s206
      %p208 = pneg %p139
      %p209 = pneg %p136
      %p210 = scmp.lt.s32.totalorder %s20, 1
      %s211 = scalar_select %p210, %s20, 1
      %p212 = scmp.lt.s32.totalorder %s21, 0
      %s213 = scalar_select %p212, %s21, 0
      %s214 = sadd.s32 %s213, %s211
      %s215 = smul.addr %s214, 2
      %s216 = scalar_lea.vmem %s3, %s215
      %p217 = scmp.lt.s32.totalorder %s20, 1
      %s218 = scalar_select %p217, %s20, 1
      %s219 = smul.addr %s218, 54
      %s220 = smul.addr %s219, 4
      %s221 = scalar_lea.vmem %s0, %s220
      %p222 = scmp.lt.s32.totalorder %s21, 0
      %s223 = scalar_select %p222, %s21, 0
      %s224 = smul.addr %s223, 4
      %s225 = scalar_lea.vmem %s1, %s224
      %s226 = smul.u32 8, %s22
      %p227 = scmp.lt.s32.totalorder %s20, 1
      %s228 = scalar_select %p227, %s20, 1
      %p229 = scmp.lt.s32.totalorder %s226, 15
      %s230 = scalar_select %p229, %s226, 15
      %p231 = scmp.lt.s32.totalorder %s21, 0
      %s232 = scalar_select %p231, %s21, 0
      %s233 = smul.addr %s230, 2
      %s234 = sadd.s32 %s232, %s233
      %s235 = smul.addr %s228, 32
      %s236 = sadd.s32 %s234, %s235
      %s237 = smul.addr %s236, 8
      %s238 = scalar_lea.vmem %s2, %s237
      %s239 = smul.u32 8, %s22
      %p240 = scmp.lt.s32.totalorder %s20, 1
      %s241 = scalar_select %p240, %s20, 1
      %p242 = scmp.lt.s32.totalorder %s21, 0
      %s243 = scalar_select %p242, %s21, 0
      %s244 = sadd.s32 %s243, %s241
      %s245 = smul.addr %s244, 2
      %s246 = scalar_lea.vmem %s3, %s245
      %s248 = smul.u32 %s22, 8
      %s249 = smul.u32 %s248, 3
      %s250 = smul.addr %s249, 4
      %s251 = scalar_lea.vmem %s221, %s250
      %v252 = vld [vmem:[%s251] sm:$0xf]
      %v253 = vld [vmem:[%s251 + $0x4] sm:$0xf]
      %v254 = vld [vmem:[%s251 + $0x8] sm:$0x1]
      %v255 = vld [vmem:[%s251 + $0xc] sm:$0xf]
      %v256 = vld [vmem:[%s251 + $0x10] sm:$0xf]
      %v257 = vld [vmem:[%s251 + $0x14] sm:$0x1]
      %v258 = vld [vmem:[%s251 + $0x18] sm:$0xf]
      %v259 = vld [vmem:[%s251 + $0x1c] sm:$0xf]
      %v260 = vld [vmem:[%s251 + $0x20] sm:$0x1]
      %v261 = vld [vmem:[%s251 + $0x24] sm:$0xf]
      %v262 = vld [vmem:[%s251 + $0x28] sm:$0xf]
      %v263 = vld [vmem:[%s251 + $0x2c] sm:$0x1]
      %v264 = vld [vmem:[%s251 + $0x30] sm:$0xf]
      %v265 = vld [vmem:[%s251 + $0x34] sm:$0xf]
      %v266 = vld [vmem:[%s251 + $0x38] sm:$0x1]
      %v267 = vld [vmem:[%s251 + $0x3c] sm:$0xf]
      %v268 = vld [vmem:[%s251 + $0x40] sm:$0xf]
      %v269 = vld [vmem:[%s251 + $0x44] sm:$0x1]
      %v270 = vld [vmem:[%s251 + $0x48] sm:$0xf]
      %v271 = vld [vmem:[%s251 + $0x4c] sm:$0xf]
      %v272 = vld [vmem:[%s251 + $0x50] sm:$0x1]
      %v273 = vld [vmem:[%s251 + $0x54] sm:$0xf]
      %v274 = vld [vmem:[%s251 + $0x58] sm:$0xf]
      %v275 = vld [vmem:[%s251 + $0x5c] sm:$0x1]
      %v276 = vld [vmem:[%s251 + $0x60] sm:$0xf]
      %v277 = vld [vmem:[%s251 + $0x64] sm:$0xf]
      %v278 = vld [vmem:[%s251 + $0x68] sm:$0x1]
      %v279 = vld [vmem:[%s251 + $0x6c] sm:$0xf]
      %v280 = vld [vmem:[%s251 + $0x70] sm:$0xf]
      %v281 = vld [vmem:[%s251 + $0x74] sm:$0x1]
      %v298 = vunpack.c.l.b16 %v252
      %v299 = vunpack.c.l.b16 %v253
      %v300 = vunpack.c.l.b16 %v255
      %v301 = vunpack.c.l.b16 %v256
      %v302 = vunpack.c.l.b16 %v258
      %v303 = vunpack.c.l.b16 %v259
      %v304 = vunpack.c.l.b16 %v261
      %v305 = vunpack.c.l.b16 %v262
      %v306 = vunpack.c.l.b16 %v264
      %v307 = vunpack.c.l.b16 %v265
      %v308 = vunpack.c.l.b16 %v267
      %v309 = vunpack.c.l.b16 %v268
      %v310 = vunpack.c.l.b16 %v270
      %v311 = vunpack.c.l.b16 %v271
      %v312 = vunpack.c.l.b16 %v273
      %v313 = vunpack.c.l.b16 %v274
      %v314 = vpack.c.b16 %v299, %v298
      %v315 = vpack.c.b16 %v301, %v300
      %v316 = vpack.c.b16 %v303, %v302
      %v317 = vpack.c.b16 %v305, %v304
      %v318 = vpack.c.b16 %v307, %v306
      %v319 = vpack.c.b16 %v309, %v308
      %v320 = vpack.c.b16 %v311, %v310
      %v321 = vpack.c.b16 %v313, %v312
      %v330 = vunpack.c.l.b16 %v254
      %v331 = vunpack.c.l.b16 %v257
      %v332 = vunpack.c.l.b16 %v260
      %v333 = vunpack.c.l.b16 %v263
      %v334 = vunpack.c.l.b16 %v266
      %v335 = vunpack.c.l.b16 %v269
      %v336 = vunpack.c.l.b16 %v272
      %v337 = vunpack.c.l.b16 %v275
      %v338 = vpack.c.b16 %v330, %v330
      %v339 = vpack.c.b16 %v331, %v331
      %v340 = vpack.c.b16 %v332, %v332
      %v341 = vpack.c.b16 %v333, %v333
      %v342 = vpack.c.b16 %v334, %v334
      %v343 = vpack.c.b16 %v335, %v335
      %v344 = vpack.c.b16 %v336, %v336
      %v345 = vpack.c.b16 %v337, %v337
      %vm346 = vsmask.f32 7424
      %v348 = vshrl.u32 %v314, 16
      %v350 = vshll.u32 %v314, 16
      %v352 = vrot.slane %v350, 1
      %v353 = vor.u32 %v348, %v352
      %v355 = vshll.u32 %v338, 16
      %v357 = vrot.slane %v355, 1
      %v358 = vsel %vm346, %v353, %v357
      %v360 = vshrl.u32 %v315, 16
      %v362 = vshll.u32 %v315, 16
      %v364 = vrot.slane %v362, 1
      %v365 = vor.u32 %v360, %v364
      %v367 = vshll.u32 %v339, 16
      %v369 = vrot.slane %v367, 1
      %v370 = vsel %vm346, %v365, %v369
      %v372 = vshrl.u32 %v316, 16
      %v374 = vshll.u32 %v316, 16
      %v376 = vrot.slane %v374, 1
      %v377 = vor.u32 %v372, %v376
      %v379 = vshll.u32 %v340, 16
      %v381 = vrot.slane %v379, 1
      %v382 = vsel %vm346, %v377, %v381
      %v384 = vshrl.u32 %v317, 16
      %v386 = vshll.u32 %v317, 16
      %v388 = vrot.slane %v386, 1
      %v389 = vor.u32 %v384, %v388
      %v391 = vshll.u32 %v341, 16
      %v393 = vrot.slane %v391, 1
      %v394 = vsel %vm346, %v389, %v393
      %v396 = vshrl.u32 %v318, 16
      %v398 = vshll.u32 %v318, 16
      %v400 = vrot.slane %v398, 1
      %v401 = vor.u32 %v396, %v400
      %v403 = vshll.u32 %v342, 16
      %v405 = vrot.slane %v403, 1
      %v406 = vsel %vm346, %v401, %v405
      %v408 = vshrl.u32 %v319, 16
      %v410 = vshll.u32 %v319, 16
      %v412 = vrot.slane %v410, 1
      %v413 = vor.u32 %v408, %v412
      %v415 = vshll.u32 %v343, 16
      %v417 = vrot.slane %v415, 1
      %v418 = vsel %vm346, %v413, %v417
      %v420 = vshrl.u32 %v320, 16
      %v422 = vshll.u32 %v320, 16
      %v424 = vrot.slane %v422, 1
      %v425 = vor.u32 %v420, %v424
      %v427 = vshll.u32 %v344, 16
      %v429 = vrot.slane %v427, 1
      %v430 = vsel %vm346, %v425, %v429
      %v432 = vshrl.u32 %v321, 16
      %v434 = vshll.u32 %v321, 16
      %v436 = vrot.slane %v434, 1
      %v437 = vor.u32 %v432, %v436
      %v439 = vshll.u32 %v345, 16
      %v441 = vrot.slane %v439, 1
      %v442 = vsel %vm346, %v437, %v441
      %443 = vrot.lane.b32.xlu0 %v358, 4
      %v444 = vpop.permute.xlu0 %443
      %445 = vrot.lane.b32.xlu0 %v370, 4
      %v446 = vpop.permute.xlu0 %445
      %447 = vrot.lane.b32.xlu0 %v382, 4
      %v448 = vpop.permute.xlu0 %447
      %449 = vrot.lane.b32.xlu0 %v394, 4
      %v450 = vpop.permute.xlu0 %449
      %451 = vrot.lane.b32.xlu0 %v406, 4
      %v452 = vpop.permute.xlu0 %451
      %453 = vrot.lane.b32.xlu0 %v418, 4
      %v454 = vpop.permute.xlu0 %453
      %455 = vrot.lane.b32.xlu0 %v430, 4
      %v456 = vpop.permute.xlu0 %455
      %457 = vrot.lane.b32.xlu0 %v442, 4
      %v458 = vpop.permute.xlu0 %457
      %vm459 = vcmask 1046528
      %v460 = vrot.slane %v314, 1
      %v461 = vrot.slane %v338, 1
      %v462 = vsel %vm459, %v460, %v461
      %v463 = vrot.slane %v315, 1
      %v464 = vrot.slane %v339, 1
      %v465 = vsel %vm459, %v463, %v464
      %v466 = vrot.slane %v316, 1
      %v467 = vrot.slane %v340, 1
      %v468 = vsel %vm459, %v466, %v467
      %v469 = vrot.slane %v317, 1
      %v470 = vrot.slane %v341, 1
      %v471 = vsel %vm459, %v469, %v470
      %v472 = vrot.slane %v318, 1
      %v473 = vrot.slane %v342, 1
      %v474 = vsel %vm459, %v472, %v473
      %v475 = vrot.slane %v319, 1
      %v476 = vrot.slane %v343, 1
      %v477 = vsel %vm459, %v475, %v476
      %v478 = vrot.slane %v320, 1
      %v479 = vrot.slane %v344, 1
      %v480 = vsel %vm459, %v478, %v479
      %v481 = vrot.slane %v321, 1
      %v482 = vrot.slane %v345, 1
      %v483 = vsel %vm459, %v481, %v482
      %484 = vrot.lane.b32.xlu0 %v462, 8
      %v485 = vpop.permute.xlu0 %484
      %486 = vrot.lane.b32.xlu0 %v465, 8
      %v487 = vpop.permute.xlu0 %486
      %488 = vrot.lane.b32.xlu0 %v468, 8
      %v489 = vpop.permute.xlu0 %488
      %490 = vrot.lane.b32.xlu0 %v471, 8
      %v491 = vpop.permute.xlu0 %490
      %492 = vrot.lane.b32.xlu0 %v474, 8
      %v493 = vpop.permute.xlu0 %492
      %494 = vrot.lane.b32.xlu0 %v477, 8
      %v495 = vpop.permute.xlu0 %494
      %496 = vrot.lane.b32.xlu0 %v480, 8
      %v497 = vpop.permute.xlu0 %496
      %498 = vrot.lane.b32.xlu0 %v483, 8
      %v499 = vpop.permute.xlu0 %498
      %v502 = vunpack.c.l.b16 %v276
      %v503 = vunpack.c.l.b16 %v277
      %v504 = vpack.c.b16 %v503, %v502
      %505 = vrot.lane.b32.xlu0 %v315, 12
      %v506 = vpop.permute.xlu0 %505
      %507 = vrot.lane.b32.xlu0 %v316, 12
      %v508 = vpop.permute.xlu0 %507
      %509 = vrot.lane.b32.xlu0 %v317, 12
      %v510 = vpop.permute.xlu0 %509
      %511 = vrot.lane.b32.xlu0 %v318, 12
      %v512 = vpop.permute.xlu0 %511
      %513 = vrot.lane.b32.xlu0 %v319, 12
      %v514 = vpop.permute.xlu0 %513
      %515 = vrot.lane.b32.xlu0 %v320, 12
      %v516 = vpop.permute.xlu0 %515
      %517 = vrot.lane.b32.xlu0 %v321, 12
      %v518 = vpop.permute.xlu0 %517
      %519 = vrot.lane.b32.xlu0 %v504, 12
      %v520 = vpop.permute.xlu0 %519
      %v522 = vunpack.c.l.b16 %v278
      %v523 = vpack.c.b16 %v522, %v522
      %v525 = vshrl.u32 %v504, 16
      %v527 = vshll.u32 %v504, 16
      %v529 = vrot.slane %v527, 1
      %v530 = vor.u32 %v525, %v529
      %v532 = vshll.u32 %v523, 16
      %v534 = vrot.slane %v532, 1
      %v535 = vsel %vm346, %v530, %v534
      %536 = vrot.lane.b32.xlu0 %v370, 16
      %v537 = vpop.permute.xlu0 %536
      %538 = vrot.lane.b32.xlu0 %v382, 16
      %v539 = vpop.permute.xlu0 %538
      %540 = vrot.lane.b32.xlu0 %v394, 16
      %v541 = vpop.permute.xlu0 %540
      %542 = vrot.lane.b32.xlu0 %v406, 16
      %v543 = vpop.permute.xlu0 %542
      %544 = vrot.lane.b32.xlu0 %v418, 16
      %v545 = vpop.permute.xlu0 %544
      %546 = vrot.lane.b32.xlu0 %v430, 16
      %v547 = vpop.permute.xlu0 %546
      %548 = vrot.lane.b32.xlu0 %v442, 16
      %v549 = vpop.permute.xlu0 %548
      %550 = vrot.lane.b32.xlu0 %v535, 16
      %v551 = vpop.permute.xlu0 %550
      %v552 = vrot.slane %v504, 1
      %v553 = vrot.slane %v523, 1
      %v554 = vsel %vm459, %v552, %v553
      %555 = vrot.lane.b32.xlu0 %v465, 20
      %v556 = vpop.permute.xlu0 %555
      %557 = vrot.lane.b32.xlu0 %v468, 20
      %v558 = vpop.permute.xlu0 %557
      %559 = vrot.lane.b32.xlu0 %v471, 20
      %v560 = vpop.permute.xlu0 %559
      %561 = vrot.lane.b32.xlu0 %v474, 20
      %v562 = vpop.permute.xlu0 %561
      %563 = vrot.lane.b32.xlu0 %v477, 20
      %v564 = vpop.permute.xlu0 %563
      %565 = vrot.lane.b32.xlu0 %v480, 20
      %v566 = vpop.permute.xlu0 %565
      %567 = vrot.lane.b32.xlu0 %v483, 20
      %v568 = vpop.permute.xlu0 %567
      %569 = vrot.lane.b32.xlu0 %v554, 20
      %v570 = vpop.permute.xlu0 %569
      %v573 = vunpack.c.l.b16 %v279
      %v574 = vunpack.c.l.b16 %v280
      %v575 = vpack.c.b16 %v574, %v573
      %576 = vrot.lane.b32.xlu0 %v316, 24
      %v577 = vpop.permute.xlu0 %576
      %578 = vrot.lane.b32.xlu0 %v317, 24
      %v579 = vpop.permute.xlu0 %578
      %580 = vrot.lane.b32.xlu0 %v318, 24
      %v581 = vpop.permute.xlu0 %580
      %582 = vrot.lane.b32.xlu0 %v319, 24
      %v583 = vpop.permute.xlu0 %582
      %584 = vrot.lane.b32.xlu0 %v320, 24
      %v585 = vpop.permute.xlu0 %584
      %586 = vrot.lane.b32.xlu0 %v321, 24
      %v587 = vpop.permute.xlu0 %586
      %588 = vrot.lane.b32.xlu0 %v504, 24
      %v589 = vpop.permute.xlu0 %588
      %590 = vrot.lane.b32.xlu0 %v575, 24
      %v591 = vpop.permute.xlu0 %590
      %v593 = vunpack.c.l.b16 %v281
      %v594 = vpack.c.b16 %v593, %v593
      %v596 = vshrl.u32 %v575, 16
      %v598 = vshll.u32 %v575, 16
      %v600 = vrot.slane %v598, 1
      %v601 = vor.u32 %v596, %v600
      %v603 = vshll.u32 %v594, 16
      %v605 = vrot.slane %v603, 1
      %v606 = vsel %vm346, %v601, %v605
      %607 = vrot.lane.b32.xlu0 %v382, 28
      %v608 = vpop.permute.xlu0 %607
      %609 = vrot.lane.b32.xlu0 %v394, 28
      %v610 = vpop.permute.xlu0 %609
      %611 = vrot.lane.b32.xlu0 %v406, 28
      %v612 = vpop.permute.xlu0 %611
      %613 = vrot.lane.b32.xlu0 %v418, 28
      %v614 = vpop.permute.xlu0 %613
      %615 = vrot.lane.b32.xlu0 %v430, 28
      %v616 = vpop.permute.xlu0 %615
      %617 = vrot.lane.b32.xlu0 %v442, 28
      %v618 = vpop.permute.xlu0 %617
      %619 = vrot.lane.b32.xlu0 %v535, 28
      %v620 = vpop.permute.xlu0 %619
      %621 = vrot.lane.b32.xlu0 %v606, 28
      %v622 = vpop.permute.xlu0 %621
      %v623 = vrot.slane %v575, 1
      %v624 = vrot.slane %v594, 1
      %v625 = vsel %vm459, %v623, %v624
      %626 = vrot.lane.b32.xlu0 %v468, 32
      %v627 = vpop.permute.xlu0 %626
      %628 = vrot.lane.b32.xlu0 %v471, 32
      %v629 = vpop.permute.xlu0 %628
      %630 = vrot.lane.b32.xlu0 %v474, 32
      %v631 = vpop.permute.xlu0 %630
      %632 = vrot.lane.b32.xlu0 %v477, 32
      %v633 = vpop.permute.xlu0 %632
      %634 = vrot.lane.b32.xlu0 %v480, 32
      %v635 = vpop.permute.xlu0 %634
      %636 = vrot.lane.b32.xlu0 %v483, 32
      %v637 = vpop.permute.xlu0 %636
      %638 = vrot.lane.b32.xlu0 %v554, 32
      %v639 = vpop.permute.xlu0 %638
      %640 = vrot.lane.b32.xlu0 %v625, 32
      %v641 = vpop.permute.xlu0 %640
      %vm642 = vcmask 31744
      %v644 = vsel %vm642, %v314, %v444
      %v646 = vsel %vm642, %v315, %v446
      %v648 = vsel %vm642, %v316, %v448
      %v650 = vsel %vm642, %v317, %v450
      %v652 = vsel %vm642, %v318, %v452
      %v654 = vsel %vm642, %v319, %v454
      %v656 = vsel %vm642, %v320, %v456
      %v658 = vsel %vm642, %v321, %v458
      %vm659 = vcmask 64512
      %v661 = vsel %vm659, %v644, %v485
      %v663 = vsel %vm659, %v646, %v487
      %v665 = vsel %vm659, %v648, %v489
      %v667 = vsel %vm659, %v650, %v491
      %v669 = vsel %vm659, %v652, %v493
      %v671 = vsel %vm659, %v654, %v495
      %v673 = vsel %vm659, %v656, %v497
      %v675 = vsel %vm659, %v658, %v499
      %vm676 = vcmask 97280
      %v678 = vsel %vm676, %v661, %v506
      %v680 = vsel %vm676, %v663, %v508
      %v682 = vsel %vm676, %v665, %v510
      %v684 = vsel %vm676, %v667, %v512
      %v686 = vsel %vm676, %v669, %v514
      %v688 = vsel %vm676, %v671, %v516
      %v690 = vsel %vm676, %v673, %v518
      %v692 = vsel %vm676, %v675, %v520
      %vm693 = vcmask 130048
      %v695 = vsel %vm693, %v678, %v537
      %v697 = vsel %vm693, %v680, %v539
      %v699 = vsel %vm693, %v682, %v541
      %v701 = vsel %vm693, %v684, %v543
      %v703 = vsel %vm693, %v686, %v545
      %v705 = vsel %vm693, %v688, %v547
      %v707 = vsel %vm693, %v690, %v549
      %v709 = vsel %vm693, %v692, %v551
      %vm710 = vcmask 162816
      %v712 = vsel %vm710, %v695, %v556
      %v714 = vsel %vm710, %v697, %v558
      %v716 = vsel %vm710, %v699, %v560
      %v718 = vsel %vm710, %v701, %v562
      %v720 = vsel %vm710, %v703, %v564
      %v722 = vsel %vm710, %v705, %v566
      %v724 = vsel %vm710, %v707, %v568
      %v726 = vsel %vm710, %v709, %v570
      %vm727 = vcmask 195584
      %v729 = vsel %vm727, %v712, %v577
      %v731 = vsel %vm727, %v714, %v579
      %v733 = vsel %vm727, %v716, %v581
      %v735 = vsel %vm727, %v718, %v583
      %v737 = vsel %vm727, %v720, %v585
      %v739 = vsel %vm727, %v722, %v587
      %v741 = vsel %vm727, %v724, %v589
      %v743 = vsel %vm727, %v726, %v591
      %vm744 = vcmask 228352
      %v746 = vsel %vm744, %v729, %v608
      %v748 = vsel %vm744, %v731, %v610
      %v750 = vsel %vm744, %v733, %v612
      %v752 = vsel %vm744, %v735, %v614
      %v754 = vsel %vm744, %v737, %v616
      %v756 = vsel %vm744, %v739, %v618
      %v758 = vsel %vm744, %v741, %v620
      %v760 = vsel %vm744, %v743, %v622
      %vm761 = vcmask 261120
      %v763 = vsel %vm761, %v746, %v627
      %v765 = vsel %vm761, %v748, %v629
      %v767 = vsel %vm761, %v750, %v631
      %v769 = vsel %vm761, %v752, %v633
      %v771 = vsel %vm761, %v754, %v635
      %v773 = vsel %vm761, %v756, %v637
      %v775 = vsel %vm761, %v758, %v639
      %v777 = vsel %vm761, %v760, %v641
      %v778 = vld [vmem:[%s225] sm:$0xf]
      %v779 = vld [vmem:[%s225 + $0x4] sm:$0xf]
      %v780 = vld [vmem:[%s225 + $0x8] sm:$0xf]
      %v781 = vld [vmem:[%s225 + $0xc] sm:$0xf]
      %v782 = vld [vmem:[%s225 + $0x10] sm:$0x3]
      %v788 = vunpack.c.l.b16 %v778
      %v789 = vunpack.c.l.b16 %v779
      %v790 = vunpack.c.l.b16 %v780
      %v791 = vunpack.c.l.b16 %v781
      %v792 = vunpack.c.l.b16 %v782
      %v793 = vpack.c.b16 %v789, %v788
      %v794 = vpack.c.b16 %v791, %v790
      %v795 = vpack.c.b16 %v792, %v792
      %vm798 = vcmask 293888
      %v799 = vsel %vm798, %v763, 0
      %v801 = vsel %vm798, %v765, 0
      %v803 = vsel %vm798, %v767, 0
      %v805 = vsel %vm798, %v769, 0
      %v807 = vsel %vm798, %v771, 0
      %v809 = vsel %vm798, %v773, 0
      %v811 = vsel %vm798, %v775, 0
      %v813 = vsel %vm798, %v777, 0
      %vm815 = vcmask 1041408
      %v817 = vsel %vm815, %v795, 0
      %819 = vmatprep.subr.bf16.mxu0 0
      %820 = vmatpush1.bf16.msra.mxu0 0
      %821 = vmatprep.subr.bf16.mxu0 0
      %822 = vmatpush1.bf16.msra.mxu0 0
      %823 = vmatprep.subr.bf16.mxu0 0
      %824 = vmatpush1.bf16.msra.mxu0 0
      %825 = vmatprep.subr.bf16.mxu0 0
      %826 = vmatpush1.bf16.msra.mxu0 0
      %827 = vmatprep.subr.bf16.mxu0 0
      %828 = vmatpush1.bf16.msra.mxu0 0
      %829 = vmatprep.subr.bf16.mxu0 0
      %830 = vmatpush1.bf16.msra.mxu0 %v817
      %831 = vmatprep.subr.bf16.mxu0 0
      %832 = vmatpush1.bf16.msra.mxu0 %v794
      %833 = vmatprep.subr.bf16.mxu0 0
      %834 = vmatpush1.bf16.msra.mxu0 %v793
      %835 = vmatprep.subr.bf16.mxu0 0
      %836 = vmatpush2.bf16.msra.mxu0 0
      %837 = vmatprep.subr.bf16.mxu0 0
      %838 = vmatpush2.bf16.msra.mxu0 0
      %839 = vmatprep.subr.bf16.mxu0 0
      %840 = vmatpush2.bf16.msra.mxu0 0
      %841 = vmatprep.subr.bf16.mxu0 0
      %842 = vmatpush2.bf16.msra.mxu0 0
      %843 = vmatprep.subr.bf16.mxu0 0
      %844 = vmatpush2.bf16.msra.mxu0 0
      %845 = vmatprep.subr.bf16.mxu0 0
      %846 = vmatpush2.bf16.msra.mxu0 0
      %847 = vmatprep.subr.bf16.mxu0 0
      %848 = vmatpush2.bf16.msra.mxu0 0
      %849 = vmatprep.subr.bf16.mxu0 0
      %850 = vmatpush2.bf16.msra.mxu0 0
      %851 = vmatprep.mubr.bf16.mxu0 0
      %852 = vmatmul.mubr.bf16.gmra.mxu0 %v799
      %v853 = vpop.f32.mrf.mxu0
      %v854 = vadd.f32 0.0, %v853
      %v855 = vpop.f32.mrf.mxu0
      %v856 = vpop.f32.mrf.mxu0
      %v857 = vadd.f32 0.0, %v856
      %v858 = vpop.f32.mrf.mxu0
      %859 = vmatprep.mubr.bf16.mxu0 0
      %860 = vmatmul.mubr.bf16.gmra.mxu0 %v801
      %v861 = vpop.f32.mrf.mxu0
      %v862 = vadd.f32 0.0, %v861
      %v863 = vpop.f32.mrf.mxu0
      %v864 = vpop.f32.mrf.mxu0
      %v865 = vadd.f32 0.0, %v864
      %v866 = vpop.f32.mrf.mxu0
      %867 = vmatprep.mubr.bf16.mxu0 0
      %868 = vmatmul.mubr.bf16.gmra.mxu0 %v803
      %v869 = vpop.f32.mrf.mxu0
      %v870 = vadd.f32 0.0, %v869
      %v871 = vpop.f32.mrf.mxu0
      %v872 = vpop.f32.mrf.mxu0
      %v873 = vadd.f32 0.0, %v872
      %v874 = vpop.f32.mrf.mxu0
      %875 = vmatprep.mubr.bf16.mxu0 0
      %876 = vmatmul.mubr.bf16.gmra.mxu0 %v805
      %v877 = vpop.f32.mrf.mxu0
      %v878 = vadd.f32 0.0, %v877
      %v879 = vpop.f32.mrf.mxu0
      %v880 = vpop.f32.mrf.mxu0
      %v881 = vadd.f32 0.0, %v880
      %v882 = vpop.f32.mrf.mxu0
      %883 = vmatprep.mubr.bf16.mxu0 0
      %884 = vmatmul.mubr.bf16.gmra.mxu0 %v807
      %v885 = vpop.f32.mrf.mxu0
      %v886 = vadd.f32 0.0, %v885
      %v887 = vpop.f32.mrf.mxu0
      %v888 = vpop.f32.mrf.mxu0
      %v889 = vadd.f32 0.0, %v888
      %v890 = vpop.f32.mrf.mxu0
      %891 = vmatprep.mubr.bf16.mxu0 0
      %892 = vmatmul.mubr.bf16.gmra.mxu0 %v809
      %v893 = vpop.f32.mrf.mxu0
      %v894 = vadd.f32 0.0, %v893
      %v895 = vpop.f32.mrf.mxu0
      %v896 = vpop.f32.mrf.mxu0
      %v897 = vadd.f32 0.0, %v896
      %v898 = vpop.f32.mrf.mxu0
      %899 = vmatprep.mubr.bf16.mxu0 0
      %900 = vmatmul.mubr.bf16.gmra.mxu0 %v811
      %v901 = vpop.f32.mrf.mxu0
      %v902 = vadd.f32 0.0, %v901
      %v903 = vpop.f32.mrf.mxu0
      %v904 = vpop.f32.mrf.mxu0
      %v905 = vadd.f32 0.0, %v904
      %v906 = vpop.f32.mrf.mxu0
      %907 = vmatprep.mubr.bf16.mxu0 0
      %908 = vmatmul.mubr.bf16.gmra.mxu0 %v813
      %v909 = vpop.f32.mrf.mxu0
      %v910 = vadd.f32 0.0, %v909
      %v911 = vpop.f32.mrf.mxu0
      %v912 = vpop.f32.mrf.mxu0
      %v913 = vadd.f32 0.0, %v912
      %v914 = vpop.f32.mrf.mxu0
      %915 = vdwg.mxu0
      %916 = vst [vmem:[%s238] sm:$0xff] %v854
      %917 = vst [vmem:[%s238 + $0x8] sm:$0xff] %v857
      %918 = vst [vmem:[%s238 + $0x10] sm:$0xff] %v862
      %919 = vst [vmem:[%s238 + $0x18] sm:$0xff] %v865
      %920 = vst [vmem:[%s238 + $0x20] sm:$0xff] %v870
      %921 = vst [vmem:[%s238 + $0x28] sm:$0xff] %v873
      %922 = vst [vmem:[%s238 + $0x30] sm:$0xff] %v878
      %923 = vst [vmem:[%s238 + $0x38] sm:$0xff] %v881
      %924 = vst [vmem:[%s238 + $0x40] sm:$0xff] %v886
      %925 = vst [vmem:[%s238 + $0x48] sm:$0xff] %v889
      %926 = vst [vmem:[%s238 + $0x50] sm:$0xff] %v894
      %927 = vst [vmem:[%s238 + $0x58] sm:$0xff] %v897
      %928 = vst [vmem:[%s238 + $0x60] sm:$0xff] %v902
      %929 = vst [vmem:[%s238 + $0x68] sm:$0xff] %v905
      %930 = vst [vmem:[%s238 + $0x70] sm:$0xff] %v910
      %931 = vst [vmem:[%s238 + $0x78] sm:$0xff] %v913
      %p932 = scmp.eq.s32.totalorder %s22, 0
      // Predicated region
      $region29: #{basic_conv_in_2d.2} parent=27 // pred_check
        %p933 = pneg %p932
      $region30: #{basic_conv_in_2d.2} parent=27 // pred_check_branch
        %935 = sbr.rel (%p933) target = $region32
      $region31: #{basic_conv_in_2d.2} parent=27 // pred_region
        %936 = vst [vmem:[%s246] sm:$0x3] 0.0
      $region32: #{basic_conv_in_2d.2} parent=27 // pred_fallthru
        _
      %v937 = vld [vmem:[%s246] sm:$0x1]
      %v938 = vadd.f32 %v854, %v857
      %v939 = vadd.f32 %v938, %v862
      %v940 = vadd.f32 %v939, %v865
      %v941 = vadd.f32 %v940, %v870
      %v942 = vadd.f32 %v941, %v873
      %v943 = vadd.f32 %v942, %v878
      %v944 = vadd.f32 %v943, %v881
      %v945 = vadd.f32 %v944, %v886
      %v946 = vadd.f32 %v945, %v889
      %v947 = vadd.f32 %v946, %v894
      %v948 = vadd.f32 %v947, %v897
      %v949 = vadd.f32 %v948, %v902
      %v950 = vadd.f32 %v949, %v905
      %v951 = vadd.f32 %v950, %v910
      %v952 = vadd.f32 %v951, %v913
      %v953 = vrot.slane %v952, 4
      %v954 = vadd.f32 %v952, %v953
      %v955 = vrot.slane %v954, 2
      %v956 = vadd.f32 %v954, %v955
      %v957 = vrot.slane %v956, 1
      %v958 = vadd.f32 %v956, %v957
      %v959 = vadd.f32 %v937, %v958
      %960 = vst [vmem:[%s246] sm:$0x1] %v959
      %v961 = vld [vmem:[%s246 + $0x1] sm:$0x1]
      %v962 = vmul.f32 %v854, %v854
      %v963 = vmul.f32 %v857, %v857
      %v964 = vmul.f32 %v862, %v862
      %v965 = vmul.f32 %v865, %v865
      %v966 = vmul.f32 %v870, %v870
      %v967 = vmul.f32 %v873, %v873
      %v968 = vmul.f32 %v878, %v878
      %v969 = vmul.f32 %v881, %v881
      %v970 = vmul.f32 %v886, %v886
      %v971 = vmul.f32 %v889, %v889
      %v972 = vmul.f32 %v894, %v894
      %v973 = vmul.f32 %v897, %v897
      %v974 = vmul.f32 %v902, %v902
      %v975 = vmul.f32 %v905, %v905
      %v976 = vmul.f32 %v910, %v910
      %v977 = vmul.f32 %v913, %v913
      %v978 = vadd.f32 %v962, %v963
      %v979 = vadd.f32 %v978, %v964
      %v980 = vadd.f32 %v979, %v965
      %v981 = vadd.f32 %v980, %v966
      %v982 = vadd.f32 %v981, %v967
      %v983 = vadd.f32 %v982, %v968
      %v984 = vadd.f32 %v983, %v969
      %v985 = vadd.f32 %v984, %v970
      %v986 = vadd.f32 %v985, %v971
      %v987 = vadd.f32 %v986, %v972
      %v988 = vadd.f32 %v987, %v973
      %v989 = vadd.f32 %v988, %v974
      %v990 = vadd.f32 %v989, %v975
      %v991 = vadd.f32 %v990, %v976
      %v992 = vadd.f32 %v991, %v977
      %v993 = vrot.slane %v992, 4
      %v994 = vadd.f32 %v992, %v993
      %v995 = vrot.slane %v994, 2
      %v996 = vadd.f32 %v994, %v995
      %v997 = vrot.slane %v996, 1
      %v998 = vadd.f32 %v996, %v997
      %v999 = vadd.f32 %v961, %v998
      %1000 = vst [vmem:[%s246 + $0x1] sm:$0x1] %v999
      %s1001 = smul.u32 8, %s22
      %p1002 = scmp.lt.s32.totalorder %s20, 1
      %s1003 = scalar_select %p1002, %s20, 1
      %p1004 = scmp.lt.s32.totalorder %s1001, 15
      %s1005 = scalar_select %p1004, %s1001, 15
      %p1006 = scmp.lt.s32.totalorder %s21, 0
      %s1007 = scalar_select %p1006, %s21, 0
      %s1008 = smul.addr %s1005, 2
      %s1009 = sadd.s32 %s1007, %s1008
      %s1010 = smul.addr %s1003, 32
      %s1011 = sadd.s32 %s1009, %s1010
      %s1012 = smul.addr %s1011, 8
      %s1013 = scalar_lea.vmem %s2, %s1012
      %p1014 = scmp.lt.s32.totalorder %s20, 1
      %s1015 = scalar_select %p1014, %s20, 1
      %p1016 = scmp.lt.s32.totalorder %s21, 0
      %s1017 = scalar_select %p1016, %s21, 0
      %s1018 = sadd.s32 %s1017, %s1015
      %s1019 = smul.addr %s1018, 2
      %s1020 = scalar_lea.vmem %s3, %s1019
      // Predicated region
      $region33: #{basic_conv_in_2d.2} parent=27 // pred_check
        %p1021 = pneg %p108
      $region34: #{basic_conv_in_2d.2} parent=27 // pred_check_branch
        %1023 = sbr.rel (%p1021) target = $region36
      $region35: #{basic_conv_in_2d.2} parent=27 // pred_region
        %s1024 = smul.u32 8, %s22
      $region36: #{basic_conv_in_2d.2} parent=27 // pred_fallthru
        _
      // Predicated region
      $region37: #{basic_conv_in_2d.2} parent=27 // pred_check
        %p1025 = pneg %p136
      $region38: #{basic_conv_in_2d.2} parent=27 // pred_check_branch
        %1027 = sbr.rel (%p1025) target = $region40
      $region39: #{basic_conv_in_2d.2} parent=27 // pred_region
        _
      $region40: #{basic_conv_in_2d.2} parent=27 // pred_fallthru
        _
    $region28: #{basic_conv_in_2d.2} parent=5 // pred_fallthru
      _
    %p1028 = scmp.le.s32.totalorder 2, %s10
    // Predicated region
    $region41: #{basic_conv_in_2d.2} parent=5 // pred_check
      %p1029 = pneg %p1028
    $region42: #{basic_conv_in_2d.2} parent=5 // pred_check_branch
      %1031 = sbr.rel (%p1029) target = $region44
    $region43: #{basic_conv_in_2d.2} parent=5 // pred_region
      %s1032 = ssub.s32 %s10, 2
      // Predicated region
      $region45: #{basic_conv_in_2d.2} parent=43 // pred_check
        %p1033 = pneg %p114
      $region46: #{basic_conv_in_2d.2} parent=43 // pred_check_branch
        %1035 = sbr.rel (%p1033) target = $region48
      $region47: #{basic_conv_in_2d.2} parent=43 // pred_region
        %s1036 = smul.u32 8, %s25
        %p1037 = scmp.lt.s32.totalorder %s23, 1
        %s1038 = scalar_select %p1037, %s23, 1
        %p1039 = scmp.lt.s32.totalorder %s1036, 15
        %s1040 = scalar_select %p1039, %s1036, 15
        %p1041 = scmp.lt.s32.totalorder %s24, 0
        %s1042 = scalar_select %p1041, %s24, 0
        %s1043 = smul.addr %s1040, 2
        %s1044 = sadd.s32 %s1042, %s1043
        %s1045 = smul.addr %s1038, 32
        %s1046 = sadd.s32 %s1044, %s1045
        %s1047 = smul.addr %s1046, 8
        %s1048 = scalar_lea.vmem %s2, %s1047
      $region48: #{basic_conv_in_2d.2} parent=43 // pred_fallthru
        _
      // Predicated region
      $region49: #{basic_conv_in_2d.2} parent=43 // pred_check
        %p1049 = pneg %p142
      $region50: #{basic_conv_in_2d.2} parent=43 // pred_check_branch
        %1051 = sbr.rel (%p1049) target = $region52
      $region51: #{basic_conv_in_2d.2} parent=43 // pred_region
        %p1052 = scmp.lt.s32.totalorder %s23, 1
        %s1053 = scalar_select %p1052, %s23, 1
        %p1054 = scmp.lt.s32.totalorder %s24, 0
        %s1055 = scalar_select %p1054, %s24, 0
        %s1056 = sadd.s32 %s1055, %s1053
        %s1057 = smul.addr %s1056, 2
        %s1058 = scalar_lea.vmem %s3, %s1057
      $region52: #{basic_conv_in_2d.2} parent=43 // pred_fallthru
        _
    $region44: #{basic_conv_in_2d.2} parent=5 // pred_fallthru
      _
  $region6: #{basic_conv_in_2d.2} parent=0 // loop_footer
    %s14 = sadd.s32 1, %s10
  $region7: #{basic_conv_in_2d.2} parent=0 // loop_footer_branch
    %9 = sbr.rel target = $region3
  $region8: #{basic_conv_in_2d.2} parent=0 // loop_exit
    _

</llo_original>
